<compile_context>
chip_gen: v7x
topology: tpu7x:2x2x1
jax: 0.10.0
libtpu: 0.0.40
codegen_flags: <defaults>
</compile_context>

<pallas_src>
import jax
import jax.numpy as jnp
from jax.experimental import pallas as pl
from jax.experimental.pallas import tpu as pltpu

INPUT_SIZE = 500
HIDDEN_SIZE = 1000
MID_SIZE = 256
OUTPUT_SIZE = 1

HID_PAD = 1024    # 1000 -> 1024 (lane aligned); padded weight rows/cols are zero
OUT_LANES = 128   # lane-dense output slab; wrapper keeps column 0

TM_MAX = 512      # amortizes per-step pipeline overhead; fits v5e's 16 MiB scoped VMEM


def mlp_kernel(x_ref, w1_ref, b1_ref, w3_ref, b3_ref, w4_ref, b4_ref, o_ref):
    # Cast the streamed f32 x tile to bf16 in-kernel (no wrapper pad/cast pass).
    xb = x_ref[...].astype(jnp.bfloat16)                                   # (tm, 500)
    # l1: bf16 MXU matmul with f32 accumulation; bias + ReLU in f32.
    h1 = jnp.dot(xb, w1_ref[...], preferred_element_type=jnp.float32)      # (tm, 1024)
    h1 = jnp.maximum(h1 + b1_ref[...], 0.0)
    # l3: cast activation to bf16 for the MXU, accumulate in f32.
    h2 = jnp.dot(h1.astype(jnp.bfloat16), w3_ref[...],
                 preferred_element_type=jnp.float32)                       # (tm, 256)
    h2 = jnp.maximum(h2 + b3_ref[...], 0.0)
    # l4 (256 -> 1): VPU multiply + cross-lane reduction instead of an N=1 MXU pass.
    out = jnp.sum(h2 * w4_ref[...], axis=-1, keepdims=True) + b4_ref[...]  # (tm, 1)
    # Lane-dense store: broadcast across 128 lanes -> unmasked vst.
    o_ref[...] = jnp.broadcast_to(out, o_ref.shape)


def _round_up(v, m):
    return (v + m - 1) // m * m


def _choose_tm(batch):
    if batch <= 16:
        # Single block covering the whole array (full-dim block shapes are always legal).
        return batch
    # Largest tile <= TM_MAX that still yields >= 2 grid steps, so the "parallel"
    # batch axis can shard across v7x's two TensorCores.
    return min(TM_MAX, _round_up((batch + 1) // 2, 16))


def network_forward(x, params):
    """x: (B, 500) float32.  Returns (B, 1) float32."""
    w1, b1, w3, b3, w4_row, b4 = params
    B = x.shape[0]

    tm = _choose_tm(B)
    B_pad = _round_up(B, tm)
    if B_pad != B:
        # Row-only pad (no column pad, no dtype cast) and only when needed.
        x = jnp.pad(x, ((0, B_pad - B), (0, 0)))

    flops = 2 * B_pad * (INPUT_SIZE * HID_PAD + HID_PAD * MID_SIZE + MID_SIZE)
    bytes_accessed = (B_pad * INPUT_SIZE * 4                  # x (f32, streamed)
                      + INPUT_SIZE * HID_PAD * 2              # w1 (bf16, resident)
                      + HID_PAD * MID_SIZE * 2                # w3 (bf16, resident)
                      + (HID_PAD + 2 * MID_SIZE + 1) * 4      # biases + w4 row
                      + B_pad * OUT_LANES * 4)                # output slab

    out = pl.pallas_call(
        mlp_kernel,
        out_shape=jax.ShapeDtypeStruct((B_pad, OUT_LANES), jnp.float32),
        grid=(B_pad // tm,),
        in_specs=[
            pl.BlockSpec((tm, INPUT_SIZE), lambda i: (i, 0)),        # x tile streams
            pl.BlockSpec((INPUT_SIZE, HID_PAD), lambda i: (0, 0)),   # w1 resident
            pl.BlockSpec((1, HID_PAD), lambda i: (0, 0)),            # b1 resident
            pl.BlockSpec((HID_PAD, MID_SIZE), lambda i: (0, 0)),     # w3 resident
            pl.BlockSpec((1, MID_SIZE), lambda i: (0, 0)),           # b3 resident
            pl.BlockSpec((1, MID_SIZE), lambda i: (0, 0)),           # w4 row resident
            pl.BlockSpec((1, OUTPUT_SIZE), lambda i: (0, 0)),        # b4 resident
        ],
        out_specs=pl.BlockSpec((tm, OUT_LANES), lambda i: (i, 0)),
        compiler_params=pltpu.CompilerParams(
            dimension_semantics=("parallel",),
            vmem_limit_bytes=32 * 1024 * 1024),
        cost_estimate=pl.CostEstimate(flops=flops, transcendentals=0,
                                      bytes_accessed=bytes_accessed),
    )(x, w1, b1, w3, b3, w4_row, b4)
    return out[:B, :OUTPUT_SIZE]


def normalized_columns_initializer(key, shape, std=1.0):
    # shape is (out_features, in_features), matching PyTorch weight layout.
    out = jax.random.normal(key, shape, dtype=jnp.float32)
    out = out * (std / jnp.sqrt(jnp.sum(out * out, axis=1, keepdims=True)))
    return out


def init_params(key):
    k1, k3, k4 = jax.random.split(key, 3)
    # PyTorch weight shapes: (out, in).  Transpose to (in, out) for x @ W.
    w1_pt = normalized_columns_initializer(k1, (HIDDEN_SIZE, INPUT_SIZE), 0.01)
    w3_pt = normalized_columns_initializer(k3, (MID_SIZE, HIDDEN_SIZE), 0.01)
    w4_pt = normalized_columns_initializer(k4, (OUTPUT_SIZE, MID_SIZE), 0.01)

    # Zero-pad hidden dim to 1024; padded cols/rows contribute nothing.
    w1 = jnp.zeros((INPUT_SIZE, HID_PAD), jnp.float32)
    w1 = w1.at[:, :HIDDEN_SIZE].set(w1_pt.T).astype(jnp.bfloat16)
    w3 = jnp.zeros((HID_PAD, MID_SIZE), jnp.float32)
    w3 = w3.at[:HIDDEN_SIZE, :].set(w3_pt.T).astype(jnp.bfloat16)
    w4_row = w4_pt.astype(jnp.float32)                  # (1, 256), used by VPU reduce

    b1 = jnp.zeros((1, HID_PAD), jnp.float32)           # biases are zero per the spec
    b3 = jnp.zeros((1, MID_SIZE), jnp.float32)
    b4 = jnp.zeros((1, OUTPUT_SIZE), jnp.float32)
    return (w1, b1, w3, b3, w4_row, b4)


if __name__ == "__main__":
    key = jax.random.PRNGKey(0)
    k_params, k_x = jax.random.split(key)
    params = init_params(k_params)

    batch = 8
    x = jax.random.normal(k_x, (batch, INPUT_SIZE), dtype=jnp.float32)

    y = network_forward(x, params)
    jax.block_until_ready(y)

    # Reference in plain JAX using the same bf16 weights / cast points.
    w1, b1, w3, b3, w4_row, b4 = params
    xb = x.astype(jnp.bfloat16).astype(jnp.float32)
    h1 = jnp.maximum(xb @ w1.astype(jnp.float32) + b1, 0.0)
    h1 = h1.astype(jnp.bfloat16).astype(jnp.float32)
    h2 = jnp.maximum(h1 @ w3.astype(jnp.float32) + b3, 0.0)
    ref = jnp.sum(h2 * w4_row, axis=-1, keepdims=True) + b4

    assert y.shape == (batch, OUTPUT_SIZE)
    assert jnp.allclose(y, ref, rtol=5e-2, atol=1e-6), (
        float(jnp.max(jnp.abs(y - ref))))

    print("KERNEL_OK")
</pallas_src>

<mosaic_0001>
module attributes {stable_mosaic.version = 11 : i64} {
  func.func @mlp_kernel(%arg0: i32, %arg1: memref<8x500xf32, #tpu.memory_space<vmem>>, %arg2: memref<500x1024xbf16, #tpu.memory_space<vmem>>, %arg3: memref<1x1024xf32, #tpu.memory_space<vmem>>, %arg4: memref<1024x256xbf16, #tpu.memory_space<vmem>>, %arg5: memref<1x256xf32, #tpu.memory_space<vmem>>, %arg6: memref<1x256xf32, #tpu.memory_space<vmem>>, %arg7: memref<1x1xf32, #tpu.memory_space<vmem>>, %arg8: memref<8x128xf32, #tpu.memory_space<vmem>>) attributes {dimension_semantics = [#tpu.dimension_semantics<parallel>], iteration_bounds = array<i64: 1>, scalar_prefetch = 0 : i64, scratch_operands = 0 : i64, tpu.core_type = #tpu.core_type<tc>, window_params = [{transform_indices = @transform_0, window_bounds = array<i64: 8, 500>}, {pipeline_mode = #tpu.pipeline_mode<synchronous>, transform_indices = @transform_1, window_bounds = array<i64: 500, 1024>}, {pipeline_mode = #tpu.pipeline_mode<synchronous>, transform_indices = @transform_2, window_bounds = array<i64: 1, 1024>}, {pipeline_mode = #tpu.pipeline_mode<synchronous>, transform_indices = @transform_3, window_bounds = array<i64: 1024, 256>}, {pipeline_mode = #tpu.pipeline_mode<synchronous>, transform_indices = @transform_4, window_bounds = array<i64: 1, 256>}, {pipeline_mode = #tpu.pipeline_mode<synchronous>, transform_indices = @transform_5, window_bounds = array<i64: 1, 256>}, {pipeline_mode = #tpu.pipeline_mode<synchronous>, transform_indices = @transform_6, window_bounds = array<i64: 1, 1>}, {transform_indices = @transform_7, window_bounds = array<i64: 8, 128>}]} {
    %c0 = arith.constant 0 : index
    %c0_0 = arith.constant 0 : index
    %0 = vector.load %arg1[%c0, %c0_0] : memref<8x500xf32, #tpu.memory_space<vmem>>, vector<8x500xf32>
    %1 = arith.truncf %0 : vector<8x500xf32> to vector<8x500xbf16>
    %c0_1 = arith.constant 0 : index
    %c0_2 = arith.constant 0 : index
    %2 = vector.load %arg2[%c0_1, %c0_2] : memref<500x1024xbf16, #tpu.memory_space<vmem>>, vector<500x1024xbf16>
    %cst = arith.constant dense<0.000000e+00> : vector<8x1024xf32>
    %3 = tpu.matmul %1, %2, %cst {dimension_numbers = #tpu.dot_dimension_numbers<[1], [0], [0], [1], [0, 0, 1, 1], [], []>} : vector<8x500xbf16>, vector<500x1024xbf16>, vector<8x1024xf32> -> vector<8x1024xf32>
    %c0_3 = arith.constant 0 : index
    %c0_4 = arith.constant 0 : index
    %4 = vector.load %arg3[%c0_3, %c0_4] : memref<1x1024xf32, #tpu.memory_space<vmem>>, vector<1x1024xf32>
    %5 = vector.broadcast %4 : vector<1x1024xf32> to vector<8x1024xf32>
    %6 = arith.addf %3, %5 : vector<8x1024xf32>
    %cst_5 = arith.constant 0.000000e+00 : f32
    %7 = vector.broadcast %cst_5 : f32 to vector<8x1024xf32>
    %8 = arith.maximumf %6, %7 : vector<8x1024xf32>
    %9 = arith.truncf %8 : vector<8x1024xf32> to vector<8x1024xbf16>
    %c0_6 = arith.constant 0 : index
    %c0_7 = arith.constant 0 : index
    %10 = vector.load %arg4[%c0_6, %c0_7] : memref<1024x256xbf16, #tpu.memory_space<vmem>>, vector<1024x256xbf16>
    %cst_8 = arith.constant dense<0.000000e+00> : vector<8x256xf32>
    %11 = tpu.matmul %9, %10, %cst_8 {dimension_numbers = #tpu.dot_dimension_numbers<[1], [0], [0], [1], [0, 0, 1, 1], [], []>} : vector<8x1024xbf16>, vector<1024x256xbf16>, vector<8x256xf32> -> vector<8x256xf32>
    %c0_9 = arith.constant 0 : index
    %c0_10 = arith.constant 0 : index
    %12 = vector.load %arg5[%c0_9, %c0_10] : memref<1x256xf32, #tpu.memory_space<vmem>>, vector<1x256xf32>
    %13 = vector.broadcast %12 : vector<1x256xf32> to vector<8x256xf32>
    %14 = arith.addf %11, %13 : vector<8x256xf32>
    %cst_11 = arith.constant 0.000000e+00 : f32
    %15 = vector.broadcast %cst_11 : f32 to vector<8x256xf32>
    %16 = arith.maximumf %14, %15 : vector<8x256xf32>
    %c0_12 = arith.constant 0 : index
    %c0_13 = arith.constant 0 : index
    %17 = vector.load %arg6[%c0_12, %c0_13] : memref<1x256xf32, #tpu.memory_space<vmem>>, vector<1x256xf32>
    %18 = vector.broadcast %17 : vector<1x256xf32> to vector<8x256xf32>
    %19 = arith.mulf %16, %18 : vector<8x256xf32>
    %cst_14 = arith.constant dense<0.000000e+00> : vector<8xf32>
    %20 = vector.multi_reduction <add>, %19, %cst_14 [1] : vector<8x256xf32> to vector<8xf32>
    %21 = vector.shape_cast %20 : vector<8xf32> to vector<8x1xf32>
    %c0_15 = arith.constant 0 : index
    %c0_16 = arith.constant 0 : index
    %22 = vector.load %arg7[%c0_15, %c0_16] : memref<1x1xf32, #tpu.memory_space<vmem>>, vector<1x1xf32>
    %23 = vector.broadcast %22 : vector<1x1xf32> to vector<8x1xf32>
    %24 = arith.addf %21, %23 : vector<8x1xf32>
    %25 = vector.shape_cast %24 : vector<8x1xf32> to vector<8x1xf32>
    %26 = vector.broadcast %25 : vector<8x1xf32> to vector<8x128xf32>
    %c0_17 = arith.constant 0 : index
    %c0_18 = arith.constant 0 : index
    %27 = vector.load %arg8[%c0_17, %c0_18] : memref<8x128xf32, #tpu.memory_space<vmem>>, vector<8x128xf32>
    tpu.vector_store %arg8[%c0_17, %c0_18], %26 {strides = array<i32>} : memref<8x128xf32, #tpu.memory_space<vmem>>, vector<8x128xf32>,
    return
  }
  func.func @transform_0(%arg0: i32) -> (i32, i32) {
    %c0_i32 = arith.constant 0 : i32
    %c0_i32_0 = arith.constant 0 : i32
    return %arg0, %c0_i32 : i32, i32
  }
  func.func @transform_1(%arg0: i32) -> (i32, i32) {
    %c0_i32 = arith.constant 0 : i32
    %c0_i32_0 = arith.constant 0 : i32
    %c0_i32_1 = arith.constant 0 : i32
    return %c0_i32, %c0_i32_0 : i32, i32
  }
  func.func @transform_2(%arg0: i32) -> (i32, i32) {
    %c0_i32 = arith.constant 0 : i32
    %c0_i32_0 = arith.constant 0 : i32
    %c0_i32_1 = arith.constant 0 : i32
    return %c0_i32, %c0_i32_0 : i32, i32
  }
  func.func @transform_3(%arg0: i32) -> (i32, i32) {
    %c0_i32 = arith.constant 0 : i32
    %c0_i32_0 = arith.constant 0 : i32
    %c0_i32_1 = arith.constant 0 : i32
    return %c0_i32, %c0_i32_0 : i32, i32
  }
  func.func @transform_4(%arg0: i32) -> (i32, i32) {
    %c0_i32 = arith.constant 0 : i32
    %c0_i32_0 = arith.constant 0 : i32
    %c0_i32_1 = arith.constant 0 : i32
    return %c0_i32, %c0_i32_0 : i32, i32
  }
  func.func @transform_5(%arg0: i32) -> (i32, i32) {
    %c0_i32 = arith.constant 0 : i32
    %c0_i32_0 = arith.constant 0 : i32
    %c0_i32_1 = arith.constant 0 : i32
    return %c0_i32, %c0_i32_0 : i32, i32
  }
  func.func @transform_6(%arg0: i32) -> (i32, i32) {
    %c0_i32 = arith.constant 0 : i32
    %c0_i32_0 = arith.constant 0 : i32
    %c0_i32_1 = arith.constant 0 : i32
    return %c0_i32, %c0_i32_0 : i32, i32
  }
  func.func @transform_7(%arg0: i32) -> (i32, i32) {
    %c0_i32 = arith.constant 0 : i32
    %c0_i32_0 = arith.constant 0 : i32
    return %arg0, %c0_i32 : i32, i32
  }
}

</mosaic_0001>

<llo_original>
// kernel: tpu_custom_call.1
$region0: #{tpu_custom_call.1}
  #allocation0 [shape = 'u32[]', space=smem, size = 0x4, offset = 0x4, fixed_abs, tag = 'smem constant byte address 0x4 - core index']
  #allocation1 [shape = 'u32[144,128]{1,0:T(1,128)}', space=vmem, size = 0x12000, scoped, tag = 'internal scratch']
  #allocation2 [shape = 'f32[1,1]{1,0:T(1,128)S(1)}', space=vmem, size = 0x200, scoped, tag = 'scoped memory for tpu_custom_call.1']
  %s0 = inlined_call_operand.hbm [shape: f32[8,500], index: 0, kind: input, shape index: {}]
  %s1 = inlined_call_operand.hbm [shape: bf16[500,1024], index: 1, kind: input, shape index: {}]
  %s2 = inlined_call_operand.vmem [shape: f32[1,1024], index: 2, kind: input, shape index: {}]
  %s3 = inlined_call_operand.hbm [shape: bf16[1024,256], index: 3, kind: input, shape index: {}]
  %s4 = inlined_call_operand.vmem [shape: f32[1,256], index: 4, kind: input, shape index: {}]
  %s5 = inlined_call_operand.vmem [shape: f32[1,256], index: 5, kind: input, shape index: {}]
  %s6 = inlined_call_operand.<no memory space> [shape: f32[1,1], index: 6, kind: input, shape index: {}]
  %s7 = inlined_call_operand.hbm [shape: f32[8,128], index: 7, kind: output, shape index: {}]
  %s8 = sld [smem:[#allocation0]]
  $region50: #{tpu_custom_call.1} parent=0
    _
  %s10 = ssub.s32 1, %s8
  %s11 = scalar_select 0, %s10, %s8
  %v12 = vstv %s6
  %13 = vst [vmem:[#allocation2] sm:$0x1] %v12
  $region1: #{tpu_custom_call.1} parent=0
    #allocation3 [shape = 'u8[16384]{0}', space=vmem, size = 0x4000, scoped, tag = 'input window, operand 0, single buffered']
    #allocation4 [shape = 's32[1]{0}', space=sflag, size = 0x4, scoped, tag = 'scoped memory for tpu_custom_call.1']
    #allocation5 [shape = 's32[1]{0}', space=sflag, size = 0x4, scoped, tag = 'scoped memory for tpu_custom_call.1']
    #allocation6 [shape = 'u8[1032192]{0}', space=vmem, size = 0xfc000, scoped, tag = 'input window, operand 1, single buffered']
    #allocation7 [shape = 's32[1]{0}', space=sflag, size = 0x4, scoped, tag = 'scoped memory for tpu_custom_call.1']
    #allocation8 [shape = 'u8[524288]{0}', space=vmem, size = 0x80000, scoped, tag = 'input window, operand 3, single buffered']
    #allocation9 [shape = 'u8[4096]{0}', space=vmem, size = 0x1000, scoped, tag = 'output window, operand 0, single buffered']
    %14 = vsyncpa [#allocation4], 0
    %15 = vsyncpa [#allocation7], 0
    %16 = vsyncpa [#allocation5], 0
    // Predicated region
    $region2: #{tpu_custom_call.1} parent=1 // pred_check
      _
    $region3: #{tpu_custom_call.1} parent=1 // pred_check_branch
      %18 = sbr.rel (0) target = $region5
    $region4: #{tpu_custom_call.1} parent=1 // pred_region
      %s20 = ssub.s32 512, 512
      %21 = vsyncadd [#allocation4], %s20
      %s23 = sshll.u32 [#allocation3], 4
      %s24 = int_to_ptr.vmem [resolvable:$true] %s23
      %26 = dma.hbm_to_vmem [thread:$0]  %s0, 512, %s24, [#allocation4]
    $region5: #{tpu_custom_call.1} parent=1 // pred_fallthru
      _
    // Predicated region
    $region6: #{tpu_custom_call.1} parent=1 // pred_check
      _
    $region7: #{tpu_custom_call.1} parent=1 // pred_check_branch
      %28 = sbr.rel (0) target = $region9
    $region8: #{tpu_custom_call.1} parent=1 // pred_region
      %s30 = ssub.s32 32256, 32256
      %31 = vsyncadd [#allocation7], %s30
      %s32 = sshll.u32 [#allocation6], 4
      %s33 = int_to_ptr.vmem [resolvable:$true] %s32
      %38 = dma.hbm_to_vmem [thread:$0]  %s1, 32256, %s33, [#allocation7], 512, 512, 32
    $region9: #{tpu_custom_call.1} parent=1 // pred_fallthru
      _
    // Predicated region
    $region10: #{tpu_custom_call.1} parent=1 // pred_check
      _
    $region11: #{tpu_custom_call.1} parent=1 // pred_check_branch
      %40 = sbr.rel (0) target = $region13
    $region12: #{tpu_custom_call.1} parent=1 // pred_region
      _
    $region13: #{tpu_custom_call.1} parent=1 // pred_fallthru
      _
    // Predicated region
    $region14: #{tpu_custom_call.1} parent=1 // pred_check
      _
    $region15: #{tpu_custom_call.1} parent=1 // pred_check_branch
      %42 = sbr.rel (0) target = $region17
    $region16: #{tpu_custom_call.1} parent=1 // pred_region
      %s44 = ssub.s32 16384, 16384
      %45 = vsyncadd [#allocation7], %s44
      %s46 = sshll.u32 [#allocation8], 4
      %s47 = int_to_ptr.vmem [resolvable:$true] %s46
      %52 = dma.hbm_to_vmem [thread:$0]  %s3, 16384, %s47, [#allocation7], 128, 128, 8
    $region17: #{tpu_custom_call.1} parent=1 // pred_fallthru
      _
    // Predicated region
    $region18: #{tpu_custom_call.1} parent=1 // pred_check
      _
    $region19: #{tpu_custom_call.1} parent=1 // pred_check_branch
      %54 = sbr.rel (0) target = $region21
    $region20: #{tpu_custom_call.1} parent=1 // pred_region
      _
    $region21: #{tpu_custom_call.1} parent=1 // pred_fallthru
      _
    // Predicated region
    $region22: #{tpu_custom_call.1} parent=1 // pred_check
      _
    $region23: #{tpu_custom_call.1} parent=1 // pred_check_branch
      %56 = sbr.rel (0) target = $region25
    $region24: #{tpu_custom_call.1} parent=1 // pred_region
      _
    $region25: #{tpu_custom_call.1} parent=1 // pred_fallthru
      _
    // Predicated region
    $region26: #{tpu_custom_call.1} parent=1 // pred_check
      _
    $region27: #{tpu_custom_call.1} parent=1 // pred_check_branch
      %58 = sbr.rel (0) target = $region29
    $region28: #{tpu_custom_call.1} parent=1 // pred_region
      _
    $region29: #{tpu_custom_call.1} parent=1 // pred_fallthru
      _
    // Predicated region
    $region30: #{tpu_custom_call.1} parent=1 // pred_check
      _
    $region31: #{tpu_custom_call.1} parent=1 // pred_check_branch
      %60 = sbr.rel (0) target = $region33
    $region32: #{tpu_custom_call.1} parent=1 // pred_region
      %61 = dma.done [#allocation4], 512
    $region33: #{tpu_custom_call.1} parent=1 // pred_fallthru
      _
    // Predicated region
    $region34: #{tpu_custom_call.1} parent=1 // pred_check
      _
    $region35: #{tpu_custom_call.1} parent=1 // pred_check_branch
      %63 = sbr.rel (0) target = $region37
    $region36: #{tpu_custom_call.1} parent=1 // pred_region
      %64 = dma.done [#allocation7], 32256
    $region37: #{tpu_custom_call.1} parent=1 // pred_fallthru
      _
    // Predicated region
    $region38: #{tpu_custom_call.1} parent=1 // pred_check
      _
    $region39: #{tpu_custom_call.1} parent=1 // pred_check_branch
      %66 = sbr.rel (0) target = $region41
    $region40: #{tpu_custom_call.1} parent=1 // pred_region
      %67 = dma.done [#allocation7], 16384
    $region41: #{tpu_custom_call.1} parent=1 // pred_fallthru
      _
    %v68 = vld [vmem:[#allocation3] sm:$0xff]
    %v69 = vld [vmem:[#allocation3 + $0x8] sm:$0xff]
    %v70 = vld [vmem:[#allocation3 + $0x10] sm:$0xff]
    %v71 = vld [vmem:[#allocation3 + $0x18] sm:$0xff]
    %v72 = vpack.c.bf16 %v68, %v68
    %v73 = vpack.c.bf16 %v69, %v69
    %v74 = vpack.c.bf16 %v70, %v70
    %v75 = vpack.c.bf16 %v71, %v71
    %v76 = vld [vmem:[#allocation6] sm:$0xff]
    %v77 = vld [vmem:[#allocation6 + $0x8] sm:$0xff]
    %v78 = vld [vmem:[#allocation6 + $0x10] sm:$0xff]
    %v79 = vld [vmem:[#allocation6 + $0x18] sm:$0xff]
    %v80 = vld [vmem:[#allocation6 + $0x20] sm:$0xff]
    %v81 = vld [vmem:[#allocation6 + $0x28] sm:$0xff]
    %v82 = vld [vmem:[#allocation6 + $0x30] sm:$0xff]
    %v83 = vld [vmem:[#allocation6 + $0x38] sm:$0xff]
    %v84 = vld [vmem:[#allocation6 + $0x40] sm:$0xff]
    %v85 = vld [vmem:[#allocation6 + $0x48] sm:$0xff]
    %v86 = vld [vmem:[#allocation6 + $0x50] sm:$0xff]
    %v87 = vld [vmem:[#allocation6 + $0x58] sm:$0xff]
    %v88 = vld [vmem:[#allocation6 + $0x60] sm:$0xff]
    %v89 = vld [vmem:[#allocation6 + $0x68] sm:$0xff]
    %v90 = vld [vmem:[#allocation6 + $0x70] sm:$0xff]
    %v91 = vld [vmem:[#allocation6 + $0x78] sm:$0xff]
    %v92 = vld [vmem:[#allocation6 + $0x80] sm:$0xff]
    %v93 = vld [vmem:[#allocation6 + $0x88] sm:$0xff]
    %v94 = vld [vmem:[#allocation6 + $0x90] sm:$0xff]
    %v95 = vld [vmem:[#allocation6 + $0x98] sm:$0xff]
    %v96 = vld [vmem:[#allocation6 + $0xa0] sm:$0xff]
    %v97 = vld [vmem:[#allocation6 + $0xa8] sm:$0xff]
    %v98 = vld [vmem:[#allocation6 + $0xb0] sm:$0xff]
    %v99 = vld [vmem:[#allocation6 + $0xb8] sm:$0xff]
    %v100 = vld [vmem:[#allocation6 + $0xc0] sm:$0xff]
    %v101 = vld [vmem:[#allocation6 + $0xc8] sm:$0xff]
    %v102 = vld [vmem:[#allocation6 + $0xd0] sm:$0xff]
    %v103 = vld [vmem:[#allocation6 + $0xd8] sm:$0xff]
    %v104 = vld [vmem:[#allocation6 + $0xe0] sm:$0xff]
    %v105 = vld [vmem:[#allocation6 + $0xe8] sm:$0xff]
    %v106 = vld [vmem:[#allocation6 + $0xf0] sm:$0xff]
    %v107 = vld [vmem:[#allocation6 + $0xf8] sm:$0xff]
    %v108 = vld [vmem:[#allocation6 + $0x100] sm:$0xff]
    %v109 = vld [vmem:[#allocation6 + $0x108] sm:$0xff]
    %v110 = vld [vmem:[#allocation6 + $0x110] sm:$0xff]
    %v111 = vld [vmem:[#allocation6 + $0x118] sm:$0xff]
    %v112 = vld [vmem:[#allocation6 + $0x120] sm:$0xff]
    %v113 = vld [vmem:[#allocation6 + $0x128] sm:$0xff]
    %v114 = vld [vmem:[#allocation6 + $0x130] sm:$0xff]
    %v115 = vld [vmem:[#allocation6 + $0x138] sm:$0xff]
    %v116 = vld [vmem:[#allocation6 + $0x140] sm:$0xff]
    %v117 = vld [vmem:[#allocation6 + $0x148] sm:$0xff]
    %v118 = vld [vmem:[#allocation6 + $0x150] sm:$0xff]
    %v119 = vld [vmem:[#allocation6 + $0x158] sm:$0xff]
    %v120 = vld [vmem:[#allocation6 + $0x160] sm:$0xff]
    %v121 = vld [vmem:[#allocation6 + $0x168] sm:$0xff]
    %v122 = vld [vmem:[#allocation6 + $0x170] sm:$0xff]
    %v123 = vld [vmem:[#allocation6 + $0x178] sm:$0xff]
    %v124 = vld [vmem:[#allocation6 + $0x180] sm:$0xff]
    %v125 = vld [vmem:[#allocation6 + $0x188] sm:$0xff]
    %v126 = vld [vmem:[#allocation6 + $0x190] sm:$0xff]
    %v127 = vld [vmem:[#allocation6 + $0x198] sm:$0xff]
    %v128 = vld [vmem:[#allocation6 + $0x1a0] sm:$0xff]
    %v129 = vld [vmem:[#allocation6 + $0x1a8] sm:$0xff]
    %v130 = vld [vmem:[#allocation6 + $0x1b0] sm:$0xff]
    %v131 = vld [vmem:[#allocation6 + $0x1b8] sm:$0xff]
    %v132 = vld [vmem:[#allocation6 + $0x1c0] sm:$0xff]
    %v133 = vld [vmem:[#allocation6 + $0x1c8] sm:$0xff]
    %v134 = vld [vmem:[#allocation6 + $0x1d0] sm:$0xff]
    %v135 = vld [vmem:[#allocation6 + $0x1d8] sm:$0xff]
    %v136 = vld [vmem:[#allocation6 + $0x1e0] sm:$0xff]
    %v137 = vld [vmem:[#allocation6 + $0x1e8] sm:$0xff]
    %v138 = vld [vmem:[#allocation6 + $0x1f0] sm:$0xff]
    %v139 = vld [vmem:[#allocation6 + $0x1f8] sm:$0xff]
    %v140 = vld [vmem:[#allocation6 + $0x200] sm:$0xff]
    %v141 = vld [vmem:[#allocation6 + $0x208] sm:$0xff]
    %v142 = vld [vmem:[#allocation6 + $0x210] sm:$0xff]
    %v143 = vld [vmem:[#allocation6 + $0x218] sm:$0xff]
    %v144 = vld [vmem:[#allocation6 + $0x220] sm:$0xff]
    %v145 = vld [vmem:[#allocation6 + $0x228] sm:$0xff]
    %v146 = vld [vmem:[#allocation6 + $0x230] sm:$0xff]
    %v147 = vld [vmem:[#allocation6 + $0x238] sm:$0xff]
    %v148 = vld [vmem:[#allocation6 + $0x240] sm:$0xff]
    %v149 = vld [vmem:[#allocation6 + $0x248] sm:$0xff]
    %v150 = vld [vmem:[#allocation6 + $0x250] sm:$0xff]
    %v151 = vld [vmem:[#allocation6 + $0x258] sm:$0xff]
    %v152 = vld [vmem:[#allocation6 + $0x260] sm:$0xff]
    %v153 = vld [vmem:[#allocation6 + $0x268] sm:$0xff]
    %v154 = vld [vmem:[#allocation6 + $0x270] sm:$0xff]
    %v155 = vld [vmem:[#allocation6 + $0x278] sm:$0xff]
    %v156 = vld [vmem:[#allocation6 + $0x280] sm:$0xff]
    %v157 = vld [vmem:[#allocation6 + $0x288] sm:$0xff]
    %v158 = vld [vmem:[#allocation6 + $0x290] sm:$0xff]
    %v159 = vld [vmem:[#allocation6 + $0x298] sm:$0xff]
    %v160 = vld [vmem:[#allocation6 + $0x2a0] sm:$0xff]
    %v161 = vld [vmem:[#allocation6 + $0x2a8] sm:$0xff]
    %v162 = vld [vmem:[#allocation6 + $0x2b0] sm:$0xff]
    %v163 = vld [vmem:[#allocation6 + $0x2b8] sm:$0xff]
    %v164 = vld [vmem:[#allocation6 + $0x2c0] sm:$0xff]
    %v165 = vld [vmem:[#allocation6 + $0x2c8] sm:$0xff]
    %v166 = vld [vmem:[#allocation6 + $0x2d0] sm:$0xff]
    %v167 = vld [vmem:[#allocation6 + $0x2d8] sm:$0xff]
    %v168 = vld [vmem:[#allocation6 + $0x2e0] sm:$0xff]
    %v169 = vld [vmem:[#allocation6 + $0x2e8] sm:$0xff]
    %v170 = vld [vmem:[#allocation6 + $0x2f0] sm:$0xff]
    %v171 = vld [vmem:[#allocation6 + $0x2f8] sm:$0xff]
    %v172 = vld [vmem:[#allocation6 + $0x300] sm:$0xff]
    %v173 = vld [vmem:[#allocation6 + $0x308] sm:$0xff]
    %v174 = vld [vmem:[#allocation6 + $0x310] sm:$0xff]
    %v175 = vld [vmem:[#allocation6 + $0x318] sm:$0xff]
    %v176 = vld [vmem:[#allocation6 + $0x320] sm:$0xff]
    %v177 = vld [vmem:[#allocation6 + $0x328] sm:$0xff]
    %v178 = vld [vmem:[#allocation6 + $0x330] sm:$0xff]
    %v179 = vld [vmem:[#allocation6 + $0x338] sm:$0xff]
    %v180 = vld [vmem:[#allocation6 + $0x340] sm:$0xff]
    %v181 = vld [vmem:[#allocation6 + $0x348] sm:$0xff]
    %v182 = vld [vmem:[#allocation6 + $0x350] sm:$0xff]
    %v183 = vld [vmem:[#allocation6 + $0x358] sm:$0xff]
    %v184 = vld [vmem:[#allocation6 + $0x360] sm:$0xff]
    %v185 = vld [vmem:[#allocation6 + $0x368] sm:$0xff]
    %v186 = vld [vmem:[#allocation6 + $0x370] sm:$0xff]
    %v187 = vld [vmem:[#allocation6 + $0x378] sm:$0xff]
    %v188 = vld [vmem:[#allocation6 + $0x380] sm:$0xff]
    %v189 = vld [vmem:[#allocation6 + $0x388] sm:$0xff]
    %v190 = vld [vmem:[#allocation6 + $0x390] sm:$0xff]
    %v191 = vld [vmem:[#allocation6 + $0x398] sm:$0xff]
    %v192 = vld [vmem:[#allocation6 + $0x3a0] sm:$0xff]
    %v193 = vld [vmem:[#allocation6 + $0x3a8] sm:$0xff]
    %v194 = vld [vmem:[#allocation6 + $0x3b0] sm:$0xff]
    %v195 = vld [vmem:[#allocation6 + $0x3b8] sm:$0xff]
    %v196 = vld [vmem:[#allocation6 + $0x3c0] sm:$0xff]
    %v197 = vld [vmem:[#allocation6 + $0x3c8] sm:$0xff]
    %v198 = vld [vmem:[#allocation6 + $0x3d0] sm:$0xff]
    %v199 = vld [vmem:[#allocation6 + $0x3d8] sm:$0xff]
    %v200 = vld [vmem:[#allocation6 + $0x3e0] sm:$0xff]
    %v201 = vld [vmem:[#allocation6 + $0x3e8] sm:$0xff]
    %v202 = vld [vmem:[#allocation6 + $0x3f0] sm:$0xff]
    %v203 = vld [vmem:[#allocation6 + $0x3f8] sm:$0xff]
    %v204 = vld [vmem:[#allocation6 + $0x400] sm:$0xff]
    %v205 = vld [vmem:[#allocation6 + $0x408] sm:$0xff]
    %v206 = vld [vmem:[#allocation6 + $0x410] sm:$0xff]
    %v207 = vld [vmem:[#allocation6 + $0x418] sm:$0xff]
    %v208 = vld [vmem:[#allocation6 + $0x420] sm:$0xff]
    %v209 = vld [vmem:[#allocation6 + $0x428] sm:$0xff]
    %v210 = vld [vmem:[#allocation6 + $0x430] sm:$0xff]
    %v211 = vld [vmem:[#allocation6 + $0x438] sm:$0xff]
    %v212 = vld [vmem:[#allocation6 + $0x440] sm:$0xff]
    %v213 = vld [vmem:[#allocation6 + $0x448] sm:$0xff]
    %v214 = vld [vmem:[#allocation6 + $0x450] sm:$0xff]
    %v215 = vld [vmem:[#allocation6 + $0x458] sm:$0xff]
    %v216 = vld [vmem:[#allocation6 + $0x460] sm:$0xff]
    %v217 = vld [vmem:[#allocation6 + $0x468] sm:$0xff]
    %v218 = vld [vmem:[#allocation6 + $0x470] sm:$0xff]
    %v219 = vld [vmem:[#allocation6 + $0x478] sm:$0xff]
    %v220 = vld [vmem:[#allocation6 + $0x480] sm:$0xff]
    %v221 = vld [vmem:[#allocation6 + $0x488] sm:$0xff]
    %v222 = vld [vmem:[#allocation6 + $0x490] sm:$0xff]
    %v223 = vld [vmem:[#allocation6 + $0x498] sm:$0xff]
    %v224 = vld [vmem:[#allocation6 + $0x4a0] sm:$0xff]
    %v225 = vld [vmem:[#allocation6 + $0x4a8] sm:$0xff]
    %v226 = vld [vmem:[#allocation6 + $0x4b0] sm:$0xff]
    %v227 = vld [vmem:[#allocation6 + $0x4b8] sm:$0xff]
    %v228 = vld [vmem:[#allocation6 + $0x4c0] sm:$0xff]
    %v229 = vld [vmem:[#allocation6 + $0x4c8] sm:$0xff]
    %v230 = vld [vmem:[#allocation6 + $0x4d0] sm:$0xff]
    %v231 = vld [vmem:[#allocation6 + $0x4d8] sm:$0xff]
    %v232 = vld [vmem:[#allocation6 + $0x4e0] sm:$0xff]
    %v233 = vld [vmem:[#allocation6 + $0x4e8] sm:$0xff]
    %v234 = vld [vmem:[#allocation6 + $0x4f0] sm:$0xff]
    %v235 = vld [vmem:[#allocation6 + $0x4f8] sm:$0xff]
    %v236 = vld [vmem:[#allocation6 + $0x500] sm:$0xff]
    %v237 = vld [vmem:[#allocation6 + $0x508] sm:$0xff]
    %v238 = vld [vmem:[#allocation6 + $0x510] sm:$0xff]
    %v239 = vld [vmem:[#allocation6 + $0x518] sm:$0xff]
    %v240 = vld [vmem:[#allocation6 + $0x520] sm:$0xff]
    %v241 = vld [vmem:[#allocation6 + $0x528] sm:$0xff]
    %v242 = vld [vmem:[#allocation6 + $0x530] sm:$0xff]
    %v243 = vld [vmem:[#allocation6 + $0x538] sm:$0xff]
    %v244 = vld [vmem:[#allocation6 + $0x540] sm:$0xff]
    %v245 = vld [vmem:[#allocation6 + $0x548] sm:$0xff]
    %v246 = vld [vmem:[#allocation6 + $0x550] sm:$0xff]
    %v247 = vld [vmem:[#allocation6 + $0x558] sm:$0xff]
    %v248 = vld [vmem:[#allocation6 + $0x560] sm:$0xff]
    %v249 = vld [vmem:[#allocation6 + $0x568] sm:$0xff]
    %v250 = vld [vmem:[#allocation6 + $0x570] sm:$0xff]
    %v251 = vld [vmem:[#allocation6 + $0x578] sm:$0xff]
    %v252 = vld [vmem:[#allocation6 + $0x580] sm:$0xff]
    %v253 = vld [vmem:[#allocation6 + $0x588] sm:$0xff]
    %v254 = vld [vmem:[#allocation6 + $0x590] sm:$0xff]
    %v255 = vld [vmem:[#allocation6 + $0x598] sm:$0xff]
    %v256 = vld [vmem:[#allocation6 + $0x5a0] sm:$0xff]
    %v257 = vld [vmem:[#allocation6 + $0x5a8] sm:$0xff]
    %v258 = vld [vmem:[#allocation6 + $0x5b0] sm:$0xff]
    %v259 = vld [vmem:[#allocation6 + $0x5b8] sm:$0xff]
    %v260 = vld [vmem:[#allocation6 + $0x5c0] sm:$0xff]
    %v261 = vld [vmem:[#allocation6 + $0x5c8] sm:$0xff]
    %v262 = vld [vmem:[#allocation6 + $0x5d0] sm:$0xff]
    %v263 = vld [vmem:[#allocation6 + $0x5d8] sm:$0xff]
    %v264 = vld [vmem:[#allocation6 + $0x5e0] sm:$0xff]
    %v265 = vld [vmem:[#allocation6 + $0x5e8] sm:$0xff]
    %v266 = vld [vmem:[#allocation6 + $0x5f0] sm:$0xff]
    %v267 = vld [vmem:[#allocation6 + $0x5f8] sm:$0xff]
    %v268 = vld [vmem:[#allocation6 + $0x600] sm:$0xff]
    %v269 = vld [vmem:[#allocation6 + $0x608] sm:$0xff]
    %v270 = vld [vmem:[#allocation6 + $0x610] sm:$0xff]
    %v271 = vld [vmem:[#allocation6 + $0x618] sm:$0xff]
    %v272 = vld [vmem:[#allocation6 + $0x620] sm:$0xff]
    %v273 = vld [vmem:[#allocation6 + $0x628] sm:$0xff]
    %v274 = vld [vmem:[#allocation6 + $0x630] sm:$0xff]
    %v275 = vld [vmem:[#allocation6 + $0x638] sm:$0xff]
    %v276 = vld [vmem:[#allocation6 + $0x640] sm:$0xff]
    %v277 = vld [vmem:[#allocation6 + $0x648] sm:$0xff]
    %v278 = vld [vmem:[#allocation6 + $0x650] sm:$0xff]
    %v279 = vld [vmem:[#allocation6 + $0x658] sm:$0xff]
    %v280 = vld [vmem:[#allocation6 + $0x660] sm:$0xff]
    %v281 = vld [vmem:[#allocation6 + $0x668] sm:$0xff]
    %v282 = vld [vmem:[#allocation6 + $0x670] sm:$0xff]
    %v283 = vld [vmem:[#allocation6 + $0x678] sm:$0xff]
    %v284 = vld [vmem:[#allocation6 + $0x680] sm:$0xff]
    %v285 = vld [vmem:[#allocation6 + $0x688] sm:$0xff]
    %v286 = vld [vmem:[#allocation6 + $0x690] sm:$0xff]
    %v287 = vld [vmem:[#allocation6 + $0x698] sm:$0xff]
    %v288 = vld [vmem:[#allocation6 + $0x6a0] sm:$0xff]
    %v289 = vld [vmem:[#allocation6 + $0x6a8] sm:$0xff]
    %v290 = vld [vmem:[#allocation6 + $0x6b0] sm:$0xff]
    %v291 = vld [vmem:[#allocation6 + $0x6b8] sm:$0xff]
    %v292 = vld [vmem:[#allocation6 + $0x6c0] sm:$0xff]
    %v293 = vld [vmem:[#allocation6 + $0x6c8] sm:$0xff]
    %v294 = vld [vmem:[#allocation6 + $0x6d0] sm:$0xff]
    %v295 = vld [vmem:[#allocation6 + $0x6d8] sm:$0xff]
    %v296 = vld [vmem:[#allocation6 + $0x6e0] sm:$0xff]
    %v297 = vld [vmem:[#allocation6 + $0x6e8] sm:$0xff]
    %v298 = vld [vmem:[#allocation6 + $0x6f0] sm:$0xff]
    %v299 = vld [vmem:[#allocation6 + $0x6f8] sm:$0xff]
    %v300 = vld [vmem:[#allocation6 + $0x700] sm:$0xff]
    %v301 = vld [vmem:[#allocation6 + $0x708] sm:$0xff]
    %v302 = vld [vmem:[#allocation6 + $0x710] sm:$0xff]
    %v303 = vld [vmem:[#allocation6 + $0x718] sm:$0xff]
    %v304 = vld [vmem:[#allocation6 + $0x720] sm:$0xff]
    %v305 = vld [vmem:[#allocation6 + $0x728] sm:$0xff]
    %v306 = vld [vmem:[#allocation6 + $0x730] sm:$0xff]
    %v307 = vld [vmem:[#allocation6 + $0x738] sm:$0xff]
    %v308 = vld [vmem:[#allocation6 + $0x740] sm:$0xff]
    %v309 = vld [vmem:[#allocation6 + $0x748] sm:$0xff]
    %v310 = vld [vmem:[#allocation6 + $0x750] sm:$0xff]
    %v311 = vld [vmem:[#allocation6 + $0x758] sm:$0xff]
    %v312 = vld [vmem:[#allocation6 + $0x760] sm:$0xff]
    %v313 = vld [vmem:[#allocation6 + $0x768] sm:$0xff]
    %v314 = vld [vmem:[#allocation6 + $0x770] sm:$0xff]
    %v315 = vld [vmem:[#allocation6 + $0x778] sm:$0xff]
    %v316 = vld [vmem:[#allocation6 + $0x780] sm:$0xff]
    %v317 = vld [vmem:[#allocation6 + $0x788] sm:$0xff]
    %v318 = vld [vmem:[#allocation6 + $0x790] sm:$0xff]
    %v319 = vld [vmem:[#allocation6 + $0x798] sm:$0xff]
    %v320 = vld [vmem:[#allocation6 + $0x7a0] sm:$0xff]
    %v321 = vld [vmem:[#allocation6 + $0x7a8] sm:$0xff]
    %v322 = vld [vmem:[#allocation6 + $0x7b0] sm:$0xff]
    %v323 = vld [vmem:[#allocation6 + $0x7b8] sm:$0xff]
    %v324 = vld [vmem:[#allocation6 + $0x7c0] sm:$0x33]
    %v325 = vld [vmem:[#allocation6 + $0x7c8] sm:$0x33]
    %v326 = vld [vmem:[#allocation6 + $0x7d0] sm:$0x33]
    %v327 = vld [vmem:[#allocation6 + $0x7d8] sm:$0x33]
    %v328 = vld [vmem:[%s2] sm:$0xff]
    %v330 = vlaneseq
    %v331 = vshrl.u32 %v330, 7
    %v332 = vsub.s32 0, %v331
    %v333 = vrot.slane %v328, %v332
    %v334 = vlaneseq
    %v335 = vshrl.u32 %v334, 7
    %v336 = vsub.s32 1, %v335
    %v337 = vrot.slane %v328, %v336
    %v338 = vlaneseq
    %v339 = vshrl.u32 %v338, 7
    %v340 = vsub.s32 2, %v339
    %v341 = vrot.slane %v328, %v340
    %v342 = vlaneseq
    %v343 = vshrl.u32 %v342, 7
    %v344 = vsub.s32 3, %v343
    %v345 = vrot.slane %v328, %v344
    %v346 = vlaneseq
    %v347 = vshrl.u32 %v346, 7
    %v348 = vsub.s32 4, %v347
    %v349 = vrot.slane %v328, %v348
    %v350 = vlaneseq
    %v351 = vshrl.u32 %v350, 7
    %v352 = vsub.s32 5, %v351
    %v353 = vrot.slane %v328, %v352
    %v354 = vlaneseq
    %v355 = vshrl.u32 %v354, 7
    %v356 = vsub.s32 6, %v355
    %v357 = vrot.slane %v328, %v356
    %v358 = vlaneseq
    %v359 = vshrl.u32 %v358, 7
    %v360 = vsub.s32 7, %v359
    %v361 = vrot.slane %v328, %v360
    %v622 = vunpack.c.l.b16 %v76
    %v623 = vunpack.c.h.b16 %v76
    %v624 = vunpack.c.l.b16 %v77
    %v625 = vunpack.c.h.b16 %v77
    %v626 = vunpack.c.l.b16 %v78
    %v627 = vunpack.c.h.b16 %v78
    %v628 = vunpack.c.l.b16 %v79
    %v629 = vunpack.c.h.b16 %v79
    %v630 = vunpack.c.l.b16 %v80
    %v631 = vunpack.c.h.b16 %v80
    %v632 = vunpack.c.l.b16 %v81
    %v633 = vunpack.c.h.b16 %v81
    %v634 = vunpack.c.l.b16 %v82
    %v635 = vunpack.c.h.b16 %v82
    %v636 = vunpack.c.l.b16 %v83
    %v637 = vunpack.c.h.b16 %v83
    %v638 = vunpack.c.l.b16 %v84
    %v639 = vunpack.c.h.b16 %v84
    %v640 = vunpack.c.l.b16 %v85
    %v641 = vunpack.c.h.b16 %v85
    %v642 = vunpack.c.l.b16 %v86
    %v643 = vunpack.c.h.b16 %v86
    %v644 = vunpack.c.l.b16 %v87
    %v645 = vunpack.c.h.b16 %v87
    %v646 = vunpack.c.l.b16 %v88
    %v647 = vunpack.c.h.b16 %v88
    %v648 = vunpack.c.l.b16 %v89
    %v649 = vunpack.c.h.b16 %v89
    %v650 = vunpack.c.l.b16 %v90
    %v651 = vunpack.c.h.b16 %v90
    %v652 = vunpack.c.l.b16 %v91
    %v653 = vunpack.c.h.b16 %v91
    %v654 = vunpack.c.l.b16 %v92
    %v655 = vunpack.c.h.b16 %v92
    %v656 = vunpack.c.l.b16 %v93
    %v657 = vunpack.c.h.b16 %v93
    %v658 = vunpack.c.l.b16 %v94
    %v659 = vunpack.c.h.b16 %v94
    %v660 = vunpack.c.l.b16 %v95
    %v661 = vunpack.c.h.b16 %v95
    %v662 = vunpack.c.l.b16 %v96
    %v663 = vunpack.c.h.b16 %v96
    %v664 = vunpack.c.l.b16 %v97
    %v665 = vunpack.c.h.b16 %v97
    %v666 = vunpack.c.l.b16 %v98
    %v667 = vunpack.c.h.b16 %v98
    %v668 = vunpack.c.l.b16 %v99
    %v669 = vunpack.c.h.b16 %v99
    %v670 = vunpack.c.l.b16 %v100
    %v671 = vunpack.c.h.b16 %v100
    %v672 = vunpack.c.l.b16 %v101
    %v673 = vunpack.c.h.b16 %v101
    %v674 = vunpack.c.l.b16 %v102
    %v675 = vunpack.c.h.b16 %v102
    %v676 = vunpack.c.l.b16 %v103
    %v677 = vunpack.c.h.b16 %v103
    %v678 = vunpack.c.l.b16 %v104
    %v679 = vunpack.c.h.b16 %v104
    %v680 = vunpack.c.l.b16 %v105
    %v681 = vunpack.c.h.b16 %v105
    %v682 = vunpack.c.l.b16 %v106
    %v683 = vunpack.c.h.b16 %v106
    %v684 = vunpack.c.l.b16 %v107
    %v685 = vunpack.c.h.b16 %v107
    %v686 = vunpack.c.l.b16 %v108
    %v687 = vunpack.c.h.b16 %v108
    %v688 = vunpack.c.l.b16 %v109
    %v689 = vunpack.c.h.b16 %v109
    %v690 = vunpack.c.l.b16 %v110
    %v691 = vunpack.c.h.b16 %v110
    %v692 = vunpack.c.l.b16 %v111
    %v693 = vunpack.c.h.b16 %v111
    %v694 = vunpack.c.l.b16 %v112
    %v695 = vunpack.c.h.b16 %v112
    %v696 = vunpack.c.l.b16 %v113
    %v697 = vunpack.c.h.b16 %v113
    %v698 = vunpack.c.l.b16 %v114
    %v699 = vunpack.c.h.b16 %v114
    %v700 = vunpack.c.l.b16 %v115
    %v701 = vunpack.c.h.b16 %v115
    %v702 = vunpack.c.l.b16 %v116
    %v703 = vunpack.c.h.b16 %v116
    %v704 = vunpack.c.l.b16 %v117
    %v705 = vunpack.c.h.b16 %v117
    %v706 = vunpack.c.l.b16 %v118
    %v707 = vunpack.c.h.b16 %v118
    %v708 = vunpack.c.l.b16 %v119
    %v709 = vunpack.c.h.b16 %v119
    %v710 = vunpack.c.l.b16 %v120
    %v711 = vunpack.c.h.b16 %v120
    %v712 = vunpack.c.l.b16 %v121
    %v713 = vunpack.c.h.b16 %v121
    %v714 = vunpack.c.l.b16 %v122
    %v715 = vunpack.c.h.b16 %v122
    %v716 = vunpack.c.l.b16 %v123
    %v717 = vunpack.c.h.b16 %v123
    %v718 = vunpack.c.l.b16 %v124
    %v719 = vunpack.c.h.b16 %v124
    %v720 = vunpack.c.l.b16 %v125
    %v721 = vunpack.c.h.b16 %v125
    %v722 = vunpack.c.l.b16 %v126
    %v723 = vunpack.c.h.b16 %v126
    %v724 = vunpack.c.l.b16 %v127
    %v725 = vunpack.c.h.b16 %v127
    %v726 = vunpack.c.l.b16 %v128
    %v727 = vunpack.c.h.b16 %v128
    %v728 = vunpack.c.l.b16 %v129
    %v729 = vunpack.c.h.b16 %v129
    %v730 = vunpack.c.l.b16 %v130
    %v731 = vunpack.c.h.b16 %v130
    %v732 = vunpack.c.l.b16 %v131
    %v733 = vunpack.c.h.b16 %v131
    %v734 = vunpack.c.l.b16 %v132
    %v735 = vunpack.c.h.b16 %v132
    %v736 = vunpack.c.l.b16 %v133
    %v737 = vunpack.c.h.b16 %v133
    %v738 = vunpack.c.l.b16 %v134
    %v739 = vunpack.c.h.b16 %v134
    %v740 = vunpack.c.l.b16 %v135
    %v741 = vunpack.c.h.b16 %v135
    %v742 = vunpack.c.l.b16 %v136
    %v743 = vunpack.c.h.b16 %v136
    %v744 = vunpack.c.l.b16 %v137
    %v745 = vunpack.c.h.b16 %v137
    %v746 = vunpack.c.l.b16 %v138
    %v747 = vunpack.c.h.b16 %v138
    %v748 = vunpack.c.l.b16 %v139
    %v749 = vunpack.c.h.b16 %v139
    %v750 = vunpack.c.l.b16 %v140
    %v751 = vunpack.c.h.b16 %v140
    %v752 = vunpack.c.l.b16 %v141
    %v753 = vunpack.c.h.b16 %v141
    %v754 = vunpack.c.l.b16 %v142
    %v755 = vunpack.c.h.b16 %v142
    %v756 = vunpack.c.l.b16 %v143
    %v757 = vunpack.c.h.b16 %v143
    %v758 = vunpack.c.l.b16 %v144
    %v759 = vunpack.c.h.b16 %v144
    %v760 = vunpack.c.l.b16 %v145
    %v761 = vunpack.c.h.b16 %v145
    %v762 = vunpack.c.l.b16 %v146
    %v763 = vunpack.c.h.b16 %v146
    %v764 = vunpack.c.l.b16 %v147
    %v765 = vunpack.c.h.b16 %v147
    %v766 = vunpack.c.l.b16 %v148
    %v767 = vunpack.c.h.b16 %v148
    %v768 = vunpack.c.l.b16 %v149
    %v769 = vunpack.c.h.b16 %v149
    %v770 = vunpack.c.l.b16 %v150
    %v771 = vunpack.c.h.b16 %v150
    %v772 = vunpack.c.l.b16 %v151
    %v773 = vunpack.c.h.b16 %v151
    %v774 = vunpack.c.l.b16 %v152
    %v775 = vunpack.c.h.b16 %v152
    %v776 = vunpack.c.l.b16 %v153
    %v777 = vunpack.c.h.b16 %v153
    %v778 = vunpack.c.l.b16 %v154
    %v779 = vunpack.c.h.b16 %v154
    %v780 = vunpack.c.l.b16 %v155
    %v781 = vunpack.c.h.b16 %v155
    %v782 = vunpack.c.l.b16 %v156
    %v783 = vunpack.c.h.b16 %v156
    %v784 = vunpack.c.l.b16 %v157
    %v785 = vunpack.c.h.b16 %v157
    %v786 = vunpack.c.l.b16 %v158
    %v787 = vunpack.c.h.b16 %v158
    %v788 = vunpack.c.l.b16 %v159
    %v789 = vunpack.c.h.b16 %v159
    %v790 = vunpack.c.l.b16 %v160
    %v791 = vunpack.c.h.b16 %v160
    %v792 = vunpack.c.l.b16 %v161
    %v793 = vunpack.c.h.b16 %v161
    %v794 = vunpack.c.l.b16 %v162
    %v795 = vunpack.c.h.b16 %v162
    %v796 = vunpack.c.l.b16 %v163
    %v797 = vunpack.c.h.b16 %v163
    %v798 = vunpack.c.l.b16 %v164
    %v799 = vunpack.c.h.b16 %v164
    %v800 = vunpack.c.l.b16 %v165
    %v801 = vunpack.c.h.b16 %v165
    %v802 = vunpack.c.l.b16 %v166
    %v803 = vunpack.c.h.b16 %v166
    %v804 = vunpack.c.l.b16 %v167
    %v805 = vunpack.c.h.b16 %v167
    %v806 = vunpack.c.l.b16 %v168
    %v807 = vunpack.c.h.b16 %v168
    %v808 = vunpack.c.l.b16 %v169
    %v809 = vunpack.c.h.b16 %v169
    %v810 = vunpack.c.l.b16 %v170
    %v811 = vunpack.c.h.b16 %v170
    %v812 = vunpack.c.l.b16 %v171
    %v813 = vunpack.c.h.b16 %v171
    %v814 = vunpack.c.l.b16 %v172
    %v815 = vunpack.c.h.b16 %v172
    %v816 = vunpack.c.l.b16 %v173
    %v817 = vunpack.c.h.b16 %v173
    %v818 = vunpack.c.l.b16 %v174
    %v819 = vunpack.c.h.b16 %v174
    %v820 = vunpack.c.l.b16 %v175
    %v821 = vunpack.c.h.b16 %v175
    %v822 = vunpack.c.l.b16 %v176
    %v823 = vunpack.c.h.b16 %v176
    %v824 = vunpack.c.l.b16 %v177
    %v825 = vunpack.c.h.b16 %v177
    %v826 = vunpack.c.l.b16 %v178
    %v827 = vunpack.c.h.b16 %v178
    %v828 = vunpack.c.l.b16 %v179
    %v829 = vunpack.c.h.b16 %v179
    %v830 = vunpack.c.l.b16 %v180
    %v831 = vunpack.c.h.b16 %v180
    %v832 = vunpack.c.l.b16 %v181
    %v833 = vunpack.c.h.b16 %v181
    %v834 = vunpack.c.l.b16 %v182
    %v835 = vunpack.c.h.b16 %v182
    %v836 = vunpack.c.l.b16 %v183
    %v837 = vunpack.c.h.b16 %v183
    %v838 = vunpack.c.l.b16 %v184
    %v839 = vunpack.c.h.b16 %v184
    %v840 = vunpack.c.l.b16 %v185
    %v841 = vunpack.c.h.b16 %v185
    %v842 = vunpack.c.l.b16 %v186
    %v843 = vunpack.c.h.b16 %v186
    %v844 = vunpack.c.l.b16 %v187
    %v845 = vunpack.c.h.b16 %v187
    %v846 = vunpack.c.l.b16 %v188
    %v847 = vunpack.c.h.b16 %v188
    %v848 = vunpack.c.l.b16 %v189
    %v849 = vunpack.c.h.b16 %v189
    %v850 = vunpack.c.l.b16 %v190
    %v851 = vunpack.c.h.b16 %v190
    %v852 = vunpack.c.l.b16 %v191
    %v853 = vunpack.c.h.b16 %v191
    %v854 = vunpack.c.l.b16 %v192
    %v855 = vunpack.c.h.b16 %v192
    %v856 = vunpack.c.l.b16 %v193
    %v857 = vunpack.c.h.b16 %v193
    %v858 = vunpack.c.l.b16 %v194
    %v859 = vunpack.c.h.b16 %v194
    %v860 = vunpack.c.l.b16 %v195
    %v861 = vunpack.c.h.b16 %v195
    %v862 = vunpack.c.l.b16 %v196
    %v863 = vunpack.c.h.b16 %v196
    %v864 = vunpack.c.l.b16 %v197
    %v865 = vunpack.c.h.b16 %v197
    %v866 = vunpack.c.l.b16 %v198
    %v867 = vunpack.c.h.b16 %v198
    %v868 = vunpack.c.l.b16 %v199
    %v869 = vunpack.c.h.b16 %v199
    %v870 = vunpack.c.l.b16 %v200
    %v871 = vunpack.c.h.b16 %v200
    %v872 = vunpack.c.l.b16 %v201
    %v873 = vunpack.c.h.b16 %v201
    %v874 = vunpack.c.l.b16 %v202
    %v875 = vunpack.c.h.b16 %v202
    %v876 = vunpack.c.l.b16 %v203
    %v877 = vunpack.c.h.b16 %v203
    %v878 = vunpack.c.l.b16 %v204
    %v879 = vunpack.c.h.b16 %v204
    %v880 = vunpack.c.l.b16 %v205
    %v881 = vunpack.c.h.b16 %v205
    %v882 = vunpack.c.l.b16 %v206
    %v883 = vunpack.c.h.b16 %v206
    %v884 = vunpack.c.l.b16 %v207
    %v885 = vunpack.c.h.b16 %v207
    %v886 = vunpack.c.l.b16 %v208
    %v887 = vunpack.c.h.b16 %v208
    %v888 = vunpack.c.l.b16 %v209
    %v889 = vunpack.c.h.b16 %v209
    %v890 = vunpack.c.l.b16 %v210
    %v891 = vunpack.c.h.b16 %v210
    %v892 = vunpack.c.l.b16 %v211
    %v893 = vunpack.c.h.b16 %v211
    %v894 = vunpack.c.l.b16 %v212
    %v895 = vunpack.c.h.b16 %v212
    %v896 = vunpack.c.l.b16 %v213
    %v897 = vunpack.c.h.b16 %v213
    %v898 = vunpack.c.l.b16 %v214
    %v899 = vunpack.c.h.b16 %v214
    %v900 = vunpack.c.l.b16 %v215
    %v901 = vunpack.c.h.b16 %v215
    %v902 = vunpack.c.l.b16 %v216
    %v903 = vunpack.c.h.b16 %v216
    %v904 = vunpack.c.l.b16 %v217
    %v905 = vunpack.c.h.b16 %v217
    %v906 = vunpack.c.l.b16 %v218
    %v907 = vunpack.c.h.b16 %v218
    %v908 = vunpack.c.l.b16 %v219
    %v909 = vunpack.c.h.b16 %v219
    %v910 = vunpack.c.l.b16 %v220
    %v911 = vunpack.c.h.b16 %v220
    %v912 = vunpack.c.l.b16 %v221
    %v913 = vunpack.c.h.b16 %v221
    %v914 = vunpack.c.l.b16 %v222
    %v915 = vunpack.c.h.b16 %v222
    %v916 = vunpack.c.l.b16 %v223
    %v917 = vunpack.c.h.b16 %v223
    %v918 = vunpack.c.l.b16 %v224
    %v919 = vunpack.c.h.b16 %v224
    %v920 = vunpack.c.l.b16 %v225
    %v921 = vunpack.c.h.b16 %v225
    %v922 = vunpack.c.l.b16 %v226
    %v923 = vunpack.c.h.b16 %v226
    %v924 = vunpack.c.l.b16 %v227
    %v925 = vunpack.c.h.b16 %v227
    %v926 = vunpack.c.l.b16 %v228
    %v927 = vunpack.c.h.b16 %v228
    %v928 = vunpack.c.l.b16 %v229
    %v929 = vunpack.c.h.b16 %v229
    %v930 = vunpack.c.l.b16 %v230
    %v931 = vunpack.c.h.b16 %v230
    %v932 = vunpack.c.l.b16 %v231
    %v933 = vunpack.c.h.b16 %v231
    %v934 = vunpack.c.l.b16 %v232
    %v935 = vunpack.c.h.b16 %v232
    %v936 = vunpack.c.l.b16 %v233
    %v937 = vunpack.c.h.b16 %v233
    %v938 = vunpack.c.l.b16 %v234
    %v939 = vunpack.c.h.b16 %v234
    %v940 = vunpack.c.l.b16 %v235
    %v941 = vunpack.c.h.b16 %v235
    %v942 = vunpack.c.l.b16 %v236
    %v943 = vunpack.c.h.b16 %v236
    %v944 = vunpack.c.l.b16 %v237
    %v945 = vunpack.c.h.b16 %v237
    %v946 = vunpack.c.l.b16 %v238
    %v947 = vunpack.c.h.b16 %v238
    %v948 = vunpack.c.l.b16 %v239
    %v949 = vunpack.c.h.b16 %v239
    %v950 = vunpack.c.l.b16 %v240
    %v951 = vunpack.c.h.b16 %v240
    %v952 = vunpack.c.l.b16 %v241
    %v953 = vunpack.c.h.b16 %v241
    %v954 = vunpack.c.l.b16 %v242
    %v955 = vunpack.c.h.b16 %v242
    %v956 = vunpack.c.l.b16 %v243
    %v957 = vunpack.c.h.b16 %v243
    %v958 = vunpack.c.l.b16 %v244
    %v959 = vunpack.c.h.b16 %v244
    %v960 = vunpack.c.l.b16 %v245
    %v961 = vunpack.c.h.b16 %v245
    %v962 = vunpack.c.l.b16 %v246
    %v963 = vunpack.c.h.b16 %v246
    %v964 = vunpack.c.l.b16 %v247
    %v965 = vunpack.c.h.b16 %v247
    %v966 = vunpack.c.l.b16 %v248
    %v967 = vunpack.c.h.b16 %v248
    %v968 = vunpack.c.l.b16 %v249
    %v969 = vunpack.c.h.b16 %v249
    %v970 = vunpack.c.l.b16 %v250
    %v971 = vunpack.c.h.b16 %v250
    %v972 = vunpack.c.l.b16 %v251
    %v973 = vunpack.c.h.b16 %v251
    %v974 = vunpack.c.l.b16 %v252
    %v975 = vunpack.c.h.b16 %v252
    %v976 = vunpack.c.l.b16 %v253
    %v977 = vunpack.c.h.b16 %v253
    %v978 = vunpack.c.l.b16 %v254
    %v979 = vunpack.c.h.b16 %v254
    %v980 = vunpack.c.l.b16 %v255
    %v981 = vunpack.c.h.b16 %v255
    %v982 = vunpack.c.l.b16 %v256
    %v983 = vunpack.c.h.b16 %v256
    %v984 = vunpack.c.l.b16 %v257
    %v985 = vunpack.c.h.b16 %v257
    %v986 = vunpack.c.l.b16 %v258
    %v987 = vunpack.c.h.b16 %v258
    %v988 = vunpack.c.l.b16 %v259
    %v989 = vunpack.c.h.b16 %v259
    %v990 = vunpack.c.l.b16 %v260
    %v991 = vunpack.c.h.b16 %v260
    %v992 = vunpack.c.l.b16 %v261
    %v993 = vunpack.c.h.b16 %v261
    %v994 = vunpack.c.l.b16 %v262
    %v995 = vunpack.c.h.b16 %v262
    %v996 = vunpack.c.l.b16 %v263
    %v997 = vunpack.c.h.b16 %v263
    %v998 = vunpack.c.l.b16 %v264
    %v999 = vunpack.c.h.b16 %v264
    %v1000 = vunpack.c.l.b16 %v265
    %v1001 = vunpack.c.h.b16 %v265
    %v1002 = vunpack.c.l.b16 %v266
    %v1003 = vunpack.c.h.b16 %v266
    %v1004 = vunpack.c.l.b16 %v267
    %v1005 = vunpack.c.h.b16 %v267
    %v1006 = vunpack.c.l.b16 %v268
    %v1007 = vunpack.c.h.b16 %v268
    %v1008 = vunpack.c.l.b16 %v269
    %v1009 = vunpack.c.h.b16 %v269
    %v1010 = vunpack.c.l.b16 %v270
    %v1011 = vunpack.c.h.b16 %v270
    %v1012 = vunpack.c.l.b16 %v271
    %v1013 = vunpack.c.h.b16 %v271
    %v1014 = vunpack.c.l.b16 %v272
    %v1015 = vunpack.c.h.b16 %v272
    %v1016 = vunpack.c.l.b16 %v273
    %v1017 = vunpack.c.h.b16 %v273
    %v1018 = vunpack.c.l.b16 %v274
    %v1019 = vunpack.c.h.b16 %v274
    %v1020 = vunpack.c.l.b16 %v275
    %v1021 = vunpack.c.h.b16 %v275
    %v1022 = vunpack.c.l.b16 %v276
    %v1023 = vunpack.c.h.b16 %v276
    %v1024 = vunpack.c.l.b16 %v277
    %v1025 = vunpack.c.h.b16 %v277
    %v1026 = vunpack.c.l.b16 %v278
    %v1027 = vunpack.c.h.b16 %v278
    %v1028 = vunpack.c.l.b16 %v279
    %v1029 = vunpack.c.h.b16 %v279
    %v1030 = vunpack.c.l.b16 %v280
    %v1031 = vunpack.c.h.b16 %v280
    %v1032 = vunpack.c.l.b16 %v281
    %v1033 = vunpack.c.h.b16 %v281
    %v1034 = vunpack.c.l.b16 %v282
    %v1035 = vunpack.c.h.b16 %v282
    %v1036 = vunpack.c.l.b16 %v283
    %v1037 = vunpack.c.h.b16 %v283
    %v1038 = vunpack.c.l.b16 %v284
    %v1039 = vunpack.c.h.b16 %v284
    %v1040 = vunpack.c.l.b16 %v285
    %v1041 = vunpack.c.h.b16 %v285
    %v1042 = vunpack.c.l.b16 %v286
    %v1043 = vunpack.c.h.b16 %v286
    %v1044 = vunpack.c.l.b16 %v287
    %v1045 = vunpack.c.h.b16 %v287
    %v1046 = vunpack.c.l.b16 %v288
    %v1047 = vunpack.c.h.b16 %v288
    %v1048 = vunpack.c.l.b16 %v289
    %v1049 = vunpack.c.h.b16 %v289
    %v1050 = vunpack.c.l.b16 %v290
    %v1051 = vunpack.c.h.b16 %v290
    %v1052 = vunpack.c.l.b16 %v291
    %v1053 = vunpack.c.h.b16 %v291
    %v1054 = vunpack.c.l.b16 %v292
    %v1055 = vunpack.c.h.b16 %v292
    %v1056 = vunpack.c.l.b16 %v293
    %v1057 = vunpack.c.h.b16 %v293
    %v1058 = vunpack.c.l.b16 %v294
    %v1059 = vunpack.c.h.b16 %v294
    %v1060 = vunpack.c.l.b16 %v295
    %v1061 = vunpack.c.h.b16 %v295
    %v1062 = vunpack.c.l.b16 %v296
    %v1063 = vunpack.c.h.b16 %v296
    %v1064 = vunpack.c.l.b16 %v297
    %v1065 = vunpack.c.h.b16 %v297
    %v1066 = vunpack.c.l.b16 %v298
    %v1067 = vunpack.c.h.b16 %v298
    %v1068 = vunpack.c.l.b16 %v299
    %v1069 = vunpack.c.h.b16 %v299
    %v1070 = vunpack.c.l.b16 %v300
    %v1071 = vunpack.c.h.b16 %v300
    %v1072 = vunpack.c.l.b16 %v301
    %v1073 = vunpack.c.h.b16 %v301
    %v1074 = vunpack.c.l.b16 %v302
    %v1075 = vunpack.c.h.b16 %v302
    %v1076 = vunpack.c.l.b16 %v303
    %v1077 = vunpack.c.h.b16 %v303
    %v1078 = vunpack.c.l.b16 %v304
    %v1079 = vunpack.c.h.b16 %v304
    %v1080 = vunpack.c.l.b16 %v305
    %v1081 = vunpack.c.h.b16 %v305
    %v1082 = vunpack.c.l.b16 %v306
    %v1083 = vunpack.c.h.b16 %v306
    %v1084 = vunpack.c.l.b16 %v307
    %v1085 = vunpack.c.h.b16 %v307
    %v1086 = vunpack.c.l.b16 %v308
    %v1087 = vunpack.c.h.b16 %v308
    %v1088 = vunpack.c.l.b16 %v309
    %v1089 = vunpack.c.h.b16 %v309
    %v1090 = vunpack.c.l.b16 %v310
    %v1091 = vunpack.c.h.b16 %v310
    %v1092 = vunpack.c.l.b16 %v311
    %v1093 = vunpack.c.h.b16 %v311
    %v1094 = vunpack.c.l.b16 %v312
    %v1095 = vunpack.c.h.b16 %v312
    %v1096 = vunpack.c.l.b16 %v313
    %v1097 = vunpack.c.h.b16 %v313
    %v1098 = vunpack.c.l.b16 %v314
    %v1099 = vunpack.c.h.b16 %v314
    %v1100 = vunpack.c.l.b16 %v315
    %v1101 = vunpack.c.h.b16 %v315
    %v1102 = vunpack.c.l.b16 %v316
    %v1103 = vunpack.c.h.b16 %v316
    %v1104 = vunpack.c.l.b16 %v317
    %v1105 = vunpack.c.h.b16 %v317
    %v1106 = vunpack.c.l.b16 %v318
    %v1107 = vunpack.c.h.b16 %v318
    %v1108 = vunpack.c.l.b16 %v319
    %v1109 = vunpack.c.h.b16 %v319
    %v1110 = vunpack.c.l.b16 %v320
    %v1111 = vunpack.c.h.b16 %v320
    %v1112 = vunpack.c.l.b16 %v321
    %v1113 = vunpack.c.h.b16 %v321
    %v1114 = vunpack.c.l.b16 %v322
    %v1115 = vunpack.c.h.b16 %v322
    %v1116 = vunpack.c.l.b16 %v323
    %v1117 = vunpack.c.h.b16 %v323
    %v1118 = vunpack.c.l.b16 %v324
    %v1119 = vunpack.c.h.b16 %v324
    %v1120 = vunpack.c.l.b16 %v325
    %v1121 = vunpack.c.h.b16 %v325
    %v1122 = vunpack.c.l.b16 %v326
    %v1123 = vunpack.c.h.b16 %v326
    %v1124 = vunpack.c.l.b16 %v327
    %v1125 = vunpack.c.h.b16 %v327
    %v1126 = vpack.c.b16 %v630, %v622
    %v1127 = vpack.c.b16 %v631, %v623
    %v1128 = vpack.c.b16 %v632, %v624
    %v1129 = vpack.c.b16 %v633, %v625
    %v1130 = vpack.c.b16 %v634, %v626
    %v1131 = vpack.c.b16 %v635, %v627
    %v1132 = vpack.c.b16 %v636, %v628
    %v1133 = vpack.c.b16 %v637, %v629
    %v1134 = vpack.c.b16 %v646, %v638
    %v1135 = vpack.c.b16 %v647, %v639
    %v1136 = vpack.c.b16 %v648, %v640
    %v1137 = vpack.c.b16 %v649, %v641
    %v1138 = vpack.c.b16 %v650, %v642
    %v1139 = vpack.c.b16 %v651, %v643
    %v1140 = vpack.c.b16 %v652, %v644
    %v1141 = vpack.c.b16 %v653, %v645
    %v1142 = vpack.c.b16 %v662, %v654
    %v1143 = vpack.c.b16 %v663, %v655
    %v1144 = vpack.c.b16 %v664, %v656
    %v1145 = vpack.c.b16 %v665, %v657
    %v1146 = vpack.c.b16 %v666, %v658
    %v1147 = vpack.c.b16 %v667, %v659
    %v1148 = vpack.c.b16 %v668, %v660
    %v1149 = vpack.c.b16 %v669, %v661
    %v1150 = vpack.c.b16 %v678, %v670
    %v1151 = vpack.c.b16 %v679, %v671
    %v1152 = vpack.c.b16 %v680, %v672
    %v1153 = vpack.c.b16 %v681, %v673
    %v1154 = vpack.c.b16 %v682, %v674
    %v1155 = vpack.c.b16 %v683, %v675
    %v1156 = vpack.c.b16 %v684, %v676
    %v1157 = vpack.c.b16 %v685, %v677
    %v1158 = vpack.c.b16 %v694, %v686
    %v1159 = vpack.c.b16 %v695, %v687
    %v1160 = vpack.c.b16 %v696, %v688
    %v1161 = vpack.c.b16 %v697, %v689
    %v1162 = vpack.c.b16 %v698, %v690
    %v1163 = vpack.c.b16 %v699, %v691
    %v1164 = vpack.c.b16 %v700, %v692
    %v1165 = vpack.c.b16 %v701, %v693
    %v1166 = vpack.c.b16 %v710, %v702
    %v1167 = vpack.c.b16 %v711, %v703
    %v1168 = vpack.c.b16 %v712, %v704
    %v1169 = vpack.c.b16 %v713, %v705
    %v1170 = vpack.c.b16 %v714, %v706
    %v1171 = vpack.c.b16 %v715, %v707
    %v1172 = vpack.c.b16 %v716, %v708
    %v1173 = vpack.c.b16 %v717, %v709
    %v1174 = vpack.c.b16 %v726, %v718
    %v1175 = vpack.c.b16 %v727, %v719
    %v1176 = vpack.c.b16 %v728, %v720
    %v1177 = vpack.c.b16 %v729, %v721
    %v1178 = vpack.c.b16 %v730, %v722
    %v1179 = vpack.c.b16 %v731, %v723
    %v1180 = vpack.c.b16 %v732, %v724
    %v1181 = vpack.c.b16 %v733, %v725
    %v1182 = vpack.c.b16 %v742, %v734
    %v1183 = vpack.c.b16 %v743, %v735
    %v1184 = vpack.c.b16 %v744, %v736
    %v1185 = vpack.c.b16 %v745, %v737
    %v1186 = vpack.c.b16 %v746, %v738
    %v1187 = vpack.c.b16 %v747, %v739
    %v1188 = vpack.c.b16 %v748, %v740
    %v1189 = vpack.c.b16 %v749, %v741
    %v1190 = vpack.c.b16 %v758, %v750
    %v1191 = vpack.c.b16 %v759, %v751
    %v1192 = vpack.c.b16 %v760, %v752
    %v1193 = vpack.c.b16 %v761, %v753
    %v1194 = vpack.c.b16 %v762, %v754
    %v1195 = vpack.c.b16 %v763, %v755
    %v1196 = vpack.c.b16 %v764, %v756
    %v1197 = vpack.c.b16 %v765, %v757
    %v1198 = vpack.c.b16 %v774, %v766
    %v1199 = vpack.c.b16 %v775, %v767
    %v1200 = vpack.c.b16 %v776, %v768
    %v1201 = vpack.c.b16 %v777, %v769
    %v1202 = vpack.c.b16 %v778, %v770
    %v1203 = vpack.c.b16 %v779, %v771
    %v1204 = vpack.c.b16 %v780, %v772
    %v1205 = vpack.c.b16 %v781, %v773
    %v1206 = vpack.c.b16 %v790, %v782
    %v1207 = vpack.c.b16 %v791, %v783
    %v1208 = vpack.c.b16 %v792, %v784
    %v1209 = vpack.c.b16 %v793, %v785
    %v1210 = vpack.c.b16 %v794, %v786
    %v1211 = vpack.c.b16 %v795, %v787
    %v1212 = vpack.c.b16 %v796, %v788
    %v1213 = vpack.c.b16 %v797, %v789
    %v1214 = vpack.c.b16 %v806, %v798
    %v1215 = vpack.c.b16 %v807, %v799
    %v1216 = vpack.c.b16 %v808, %v800
    %v1217 = vpack.c.b16 %v809, %v801
    %v1218 = vpack.c.b16 %v810, %v802
    %v1219 = vpack.c.b16 %v811, %v803
    %v1220 = vpack.c.b16 %v812, %v804
    %v1221 = vpack.c.b16 %v813, %v805
    %v1222 = vpack.c.b16 %v822, %v814
    %v1223 = vpack.c.b16 %v823, %v815
    %v1224 = vpack.c.b16 %v824, %v816
    %v1225 = vpack.c.b16 %v825, %v817
    %v1226 = vpack.c.b16 %v826, %v818
    %v1227 = vpack.c.b16 %v827, %v819
    %v1228 = vpack.c.b16 %v828, %v820
    %v1229 = vpack.c.b16 %v829, %v821
    %v1230 = vpack.c.b16 %v838, %v830
    %v1231 = vpack.c.b16 %v839, %v831
    %v1232 = vpack.c.b16 %v840, %v832
    %v1233 = vpack.c.b16 %v841, %v833
    %v1234 = vpack.c.b16 %v842, %v834
    %v1235 = vpack.c.b16 %v843, %v835
    %v1236 = vpack.c.b16 %v844, %v836
    %v1237 = vpack.c.b16 %v845, %v837
    %v1238 = vpack.c.b16 %v854, %v846
    %v1239 = vpack.c.b16 %v855, %v847
    %v1240 = vpack.c.b16 %v856, %v848
    %v1241 = vpack.c.b16 %v857, %v849
    %v1242 = vpack.c.b16 %v858, %v850
    %v1243 = vpack.c.b16 %v859, %v851
    %v1244 = vpack.c.b16 %v860, %v852
    %v1245 = vpack.c.b16 %v861, %v853
    %v1246 = vpack.c.b16 %v870, %v862
    %v1247 = vpack.c.b16 %v871, %v863
    %v1248 = vpack.c.b16 %v872, %v864
    %v1249 = vpack.c.b16 %v873, %v865
    %v1250 = vpack.c.b16 %v874, %v866
    %v1251 = vpack.c.b16 %v875, %v867
    %v1252 = vpack.c.b16 %v876, %v868
    %v1253 = vpack.c.b16 %v877, %v869
    %v1254 = vpack.c.b16 %v886, %v878
    %v1255 = vpack.c.b16 %v887, %v879
    %v1256 = vpack.c.b16 %v888, %v880
    %v1257 = vpack.c.b16 %v889, %v881
    %v1258 = vpack.c.b16 %v890, %v882
    %v1259 = vpack.c.b16 %v891, %v883
    %v1260 = vpack.c.b16 %v892, %v884
    %v1261 = vpack.c.b16 %v893, %v885
    %v1262 = vpack.c.b16 %v902, %v894
    %v1263 = vpack.c.b16 %v903, %v895
    %v1264 = vpack.c.b16 %v904, %v896
    %v1265 = vpack.c.b16 %v905, %v897
    %v1266 = vpack.c.b16 %v906, %v898
    %v1267 = vpack.c.b16 %v907, %v899
    %v1268 = vpack.c.b16 %v908, %v900
    %v1269 = vpack.c.b16 %v909, %v901
    %v1270 = vpack.c.b16 %v918, %v910
    %v1271 = vpack.c.b16 %v919, %v911
    %v1272 = vpack.c.b16 %v920, %v912
    %v1273 = vpack.c.b16 %v921, %v913
    %v1274 = vpack.c.b16 %v922, %v914
    %v1275 = vpack.c.b16 %v923, %v915
    %v1276 = vpack.c.b16 %v924, %v916
    %v1277 = vpack.c.b16 %v925, %v917
    %v1278 = vpack.c.b16 %v934, %v926
    %v1279 = vpack.c.b16 %v935, %v927
    %v1280 = vpack.c.b16 %v936, %v928
    %v1281 = vpack.c.b16 %v937, %v929
    %v1282 = vpack.c.b16 %v938, %v930
    %v1283 = vpack.c.b16 %v939, %v931
    %v1284 = vpack.c.b16 %v940, %v932
    %v1285 = vpack.c.b16 %v941, %v933
    %v1286 = vpack.c.b16 %v950, %v942
    %v1287 = vpack.c.b16 %v951, %v943
    %v1288 = vpack.c.b16 %v952, %v944
    %v1289 = vpack.c.b16 %v953, %v945
    %v1290 = vpack.c.b16 %v954, %v946
    %v1291 = vpack.c.b16 %v955, %v947
    %v1292 = vpack.c.b16 %v956, %v948
    %v1293 = vpack.c.b16 %v957, %v949
    %v1294 = vpack.c.b16 %v966, %v958
    %v1295 = vpack.c.b16 %v967, %v959
    %v1296 = vpack.c.b16 %v968, %v960
    %v1297 = vpack.c.b16 %v969, %v961
    %v1298 = vpack.c.b16 %v970, %v962
    %v1299 = vpack.c.b16 %v971, %v963
    %v1300 = vpack.c.b16 %v972, %v964
    %v1301 = vpack.c.b16 %v973, %v965
    %v1302 = vpack.c.b16 %v982, %v974
    %v1303 = vpack.c.b16 %v983, %v975
    %v1304 = vpack.c.b16 %v984, %v976
    %v1305 = vpack.c.b16 %v985, %v977
    %v1306 = vpack.c.b16 %v986, %v978
    %v1307 = vpack.c.b16 %v987, %v979
    %v1308 = vpack.c.b16 %v988, %v980
    %v1309 = vpack.c.b16 %v989, %v981
    %v1310 = vpack.c.b16 %v998, %v990
    %v1311 = vpack.c.b16 %v999, %v991
    %v1312 = vpack.c.b16 %v1000, %v992
    %v1313 = vpack.c.b16 %v1001, %v993
    %v1314 = vpack.c.b16 %v1002, %v994
    %v1315 = vpack.c.b16 %v1003, %v995
    %v1316 = vpack.c.b16 %v1004, %v996
    %v1317 = vpack.c.b16 %v1005, %v997
    %v1318 = vpack.c.b16 %v1014, %v1006
    %v1319 = vpack.c.b16 %v1015, %v1007
    %v1320 = vpack.c.b16 %v1016, %v1008
    %v1321 = vpack.c.b16 %v1017, %v1009
    %v1322 = vpack.c.b16 %v1018, %v1010
    %v1323 = vpack.c.b16 %v1019, %v1011
    %v1324 = vpack.c.b16 %v1020, %v1012
    %v1325 = vpack.c.b16 %v1021, %v1013
    %v1326 = vpack.c.b16 %v1030, %v1022
    %v1327 = vpack.c.b16 %v1031, %v1023
    %v1328 = vpack.c.b16 %v1032, %v1024
    %v1329 = vpack.c.b16 %v1033, %v1025
    %v1330 = vpack.c.b16 %v1034, %v1026
    %v1331 = vpack.c.b16 %v1035, %v1027
    %v1332 = vpack.c.b16 %v1036, %v1028
    %v1333 = vpack.c.b16 %v1037, %v1029
    %v1334 = vpack.c.b16 %v1046, %v1038
    %v1335 = vpack.c.b16 %v1047, %v1039
    %v1336 = vpack.c.b16 %v1048, %v1040
    %v1337 = vpack.c.b16 %v1049, %v1041
    %v1338 = vpack.c.b16 %v1050, %v1042
    %v1339 = vpack.c.b16 %v1051, %v1043
    %v1340 = vpack.c.b16 %v1052, %v1044
    %v1341 = vpack.c.b16 %v1053, %v1045
    %v1342 = vpack.c.b16 %v1062, %v1054
    %v1343 = vpack.c.b16 %v1063, %v1055
    %v1344 = vpack.c.b16 %v1064, %v1056
    %v1345 = vpack.c.b16 %v1065, %v1057
    %v1346 = vpack.c.b16 %v1066, %v1058
    %v1347 = vpack.c.b16 %v1067, %v1059
    %v1348 = vpack.c.b16 %v1068, %v1060
    %v1349 = vpack.c.b16 %v1069, %v1061
    %v1350 = vpack.c.b16 %v1078, %v1070
    %v1351 = vpack.c.b16 %v1079, %v1071
    %v1352 = vpack.c.b16 %v1080, %v1072
    %v1353 = vpack.c.b16 %v1081, %v1073
    %v1354 = vpack.c.b16 %v1082, %v1074
    %v1355 = vpack.c.b16 %v1083, %v1075
    %v1356 = vpack.c.b16 %v1084, %v1076
    %v1357 = vpack.c.b16 %v1085, %v1077
    %v1358 = vpack.c.b16 %v1094, %v1086
    %v1359 = vpack.c.b16 %v1095, %v1087
    %v1360 = vpack.c.b16 %v1096, %v1088
    %v1361 = vpack.c.b16 %v1097, %v1089
    %v1362 = vpack.c.b16 %v1098, %v1090
    %v1363 = vpack.c.b16 %v1099, %v1091
    %v1364 = vpack.c.b16 %v1100, %v1092
    %v1365 = vpack.c.b16 %v1101, %v1093
    %v1366 = vpack.c.b16 %v1110, %v1102
    %v1367 = vpack.c.b16 %v1111, %v1103
    %v1368 = vpack.c.b16 %v1112, %v1104
    %v1369 = vpack.c.b16 %v1113, %v1105
    %v1370 = vpack.c.b16 %v1114, %v1106
    %v1371 = vpack.c.b16 %v1115, %v1107
    %v1372 = vpack.c.b16 %v1116, %v1108
    %v1373 = vpack.c.b16 %v1117, %v1109
    %v1374 = vpack.c.b16 %v1118, %v1118
    %v1375 = vpack.c.b16 %v1119, %v1119
    %v1376 = vpack.c.b16 %v1120, %v1120
    %v1377 = vpack.c.b16 %v1121, %v1121
    %v1378 = vpack.c.b16 %v1122, %v1122
    %v1379 = vpack.c.b16 %v1123, %v1123
    %v1380 = vpack.c.b16 %v1124, %v1124
    %v1381 = vpack.c.b16 %v1125, %v1125
    %vm1630 = vcmask 949248
    %v1632 = vsel %vm1630, %v75, 0
    %vm1634 = vcmask 1041408
    %v1636 = vsel %vm1634, %v1374, 0
    %v1639 = vsel %vm1634, %v1375, 0
    %v1642 = vsel %vm1634, %v1376, 0
    %v1645 = vsel %vm1634, %v1377, 0
    %v1648 = vsel %vm1634, %v1378, 0
    %v1651 = vsel %vm1634, %v1379, 0
    %v1654 = vsel %vm1634, %v1380, 0
    %v1657 = vsel %vm1634, %v1381, 0
    %1659 = vmatprep.subr.bf16.mxu0 %v1127
    %1660 = vmatpush1.bf16.msra.mxu0 %v1126
    %1661 = vmatprep.subr.bf16.mxu0 %v1135
    %1662 = vmatpush1.bf16.msra.mxu0 %v1134
    %1663 = vmatprep.subr.bf16.mxu0 %v1143
    %1664 = vmatpush1.bf16.msra.mxu0 %v1142
    %1665 = vmatprep.subr.bf16.mxu0 %v1151
    %1666 = vmatpush1.bf16.msra.mxu0 %v1150
    %1667 = vmatprep.subr.bf16.mxu0 %v1159
    %1668 = vmatpush1.bf16.msra.mxu0 %v1158
    %1669 = vmatprep.subr.bf16.mxu0 %v1167
    %1670 = vmatpush1.bf16.msra.mxu0 %v1166
    %1671 = vmatprep.subr.bf16.mxu0 %v1175
    %1672 = vmatpush1.bf16.msra.mxu0 %v1174
    %1673 = vmatprep.subr.bf16.mxu0 %v1183
    %1674 = vmatpush1.bf16.msra.mxu0 %v1182
    %1675 = vmatprep.subr.bf16.mxu0 %v1191
    %1676 = vmatpush1.bf16.msra.mxu0 %v1190
    %1677 = vmatprep.subr.bf16.mxu0 %v1199
    %1678 = vmatpush1.bf16.msra.mxu0 %v1198
    %1679 = vmatprep.subr.bf16.mxu0 %v1207
    %1680 = vmatpush1.bf16.msra.mxu0 %v1206
    %1681 = vmatprep.subr.bf16.mxu0 %v1215
    %1682 = vmatpush1.bf16.msra.mxu0 %v1214
    %1683 = vmatprep.subr.bf16.mxu0 %v1223
    %1684 = vmatpush1.bf16.msra.mxu0 %v1222
    %1685 = vmatprep.subr.bf16.mxu0 %v1231
    %1686 = vmatpush1.bf16.msra.mxu0 %v1230
    %1687 = vmatprep.subr.bf16.mxu0 %v1239
    %1688 = vmatpush1.bf16.msra.mxu0 %v1238
    %1689 = vmatprep.subr.bf16.mxu0 %v1247
    %1690 = vmatpush1.bf16.msra.mxu0 %v1246
    %1691 = vmatprep.mubr.bf16.mxu0 %v73
    %1692 = vmatmul.mubr.bf16.gmra.mrb[0].mxu0 %v72
    %v1693 = vpop.f32.mrb[0].mxu0
    %v1694 = vadd.f32 %v333, %v1693
    %v1695 = vpop.f32.mrb[0].mxu0
    %v1696 = vadd.f32 %v337, %v1695
    %v1697 = vpop.f32.mrb[0].mxu0
    %v1698 = vpop.f32.mrb[0].mxu0
    %1699 = vdwg.mxu0
    %1700 = vmatprep.subr.bf16.mxu0 %v1255
    %1701 = vmatpush1.bf16.msra.mxu0 %v1254
    %1702 = vmatprep.subr.bf16.mxu0 %v1263
    %1703 = vmatpush1.bf16.msra.mxu0 %v1262
    %1704 = vmatprep.subr.bf16.mxu0 %v1271
    %1705 = vmatpush1.bf16.msra.mxu0 %v1270
    %1706 = vmatprep.subr.bf16.mxu0 %v1279
    %1707 = vmatpush1.bf16.msra.mxu0 %v1278
    %1708 = vmatprep.subr.bf16.mxu0 %v1287
    %1709 = vmatpush1.bf16.msra.mxu0 %v1286
    %1710 = vmatprep.subr.bf16.mxu0 %v1295
    %1711 = vmatpush1.bf16.msra.mxu0 %v1294
    %1712 = vmatprep.subr.bf16.mxu0 %v1303
    %1713 = vmatpush1.bf16.msra.mxu0 %v1302
    %1714 = vmatprep.subr.bf16.mxu0 %v1311
    %1715 = vmatpush1.bf16.msra.mxu0 %v1310
    %1716 = vmatprep.subr.bf16.mxu0 %v1319
    %1717 = vmatpush1.bf16.msra.mxu0 %v1318
    %1718 = vmatprep.subr.bf16.mxu0 %v1327
    %1719 = vmatpush1.bf16.msra.mxu0 %v1326
    %1720 = vmatprep.subr.bf16.mxu0 %v1335
    %1721 = vmatpush1.bf16.msra.mxu0 %v1334
    %1722 = vmatprep.subr.bf16.mxu0 %v1343
    %1723 = vmatpush1.bf16.msra.mxu0 %v1342
    %1724 = vmatprep.subr.bf16.mxu0 %v1351
    %1725 = vmatpush1.bf16.msra.mxu0 %v1350
    %1726 = vmatprep.subr.bf16.mxu0 %v1359
    %1727 = vmatpush1.bf16.msra.mxu0 %v1358
    %1728 = vmatprep.subr.bf16.mxu0 %v1367
    %1729 = vmatpush1.bf16.msra.mxu0 %v1366
    %1730 = vmatprep.subr.bf16.mxu0 %v1639
    %1731 = vmatpush1.bf16.msra.mxu0 %v1636
    %1732 = vmatprep.mubr.bf16.mxu0 %v1632
    %1733 = vmatmul.mubr.bf16.gmra.mrb[0].mxu0 %v74
    %v1734 = vpop.f32.mrb[0].mxu0
    %v1735 = vadd.f32 %v1694, %v1734
    %v1736 = vpop.f32.mrb[0].mxu0
    %v1737 = vadd.f32 %v1696, %v1736
    %v1738 = vpop.f32.mrb[0].mxu0
    %v1739 = vpop.f32.mrb[0].mxu0
    %1740 = vdwg.mxu0
    %1741 = vmatprep.subr.bf16.mxu0 %v1129
    %1742 = vmatpush1.bf16.msra.mxu0 %v1128
    %1743 = vmatprep.subr.bf16.mxu0 %v1137
    %1744 = vmatpush1.bf16.msra.mxu0 %v1136
    %1745 = vmatprep.subr.bf16.mxu0 %v1145
    %1746 = vmatpush1.bf16.msra.mxu0 %v1144
    %1747 = vmatprep.subr.bf16.mxu0 %v1153
    %1748 = vmatpush1.bf16.msra.mxu0 %v1152
    %1749 = vmatprep.subr.bf16.mxu0 %v1161
    %1750 = vmatpush1.bf16.msra.mxu0 %v1160
    %1751 = vmatprep.subr.bf16.mxu0 %v1169
    %1752 = vmatpush1.bf16.msra.mxu0 %v1168
    %1753 = vmatprep.subr.bf16.mxu0 %v1177
    %1754 = vmatpush1.bf16.msra.mxu0 %v1176
    %1755 = vmatprep.subr.bf16.mxu0 %v1185
    %1756 = vmatpush1.bf16.msra.mxu0 %v1184
    %1757 = vmatprep.subr.bf16.mxu0 %v1193
    %1758 = vmatpush1.bf16.msra.mxu0 %v1192
    %1759 = vmatprep.subr.bf16.mxu0 %v1201
    %1760 = vmatpush1.bf16.msra.mxu0 %v1200
    %1761 = vmatprep.subr.bf16.mxu0 %v1209
    %1762 = vmatpush1.bf16.msra.mxu0 %v1208
    %1763 = vmatprep.subr.bf16.mxu0 %v1217
    %1764 = vmatpush1.bf16.msra.mxu0 %v1216
    %1765 = vmatprep.subr.bf16.mxu0 %v1225
    %1766 = vmatpush1.bf16.msra.mxu0 %v1224
    %1767 = vmatprep.subr.bf16.mxu0 %v1233
    %1768 = vmatpush1.bf16.msra.mxu0 %v1232
    %1769 = vmatprep.subr.bf16.mxu0 %v1241
    %1770 = vmatpush1.bf16.msra.mxu0 %v1240
    %1771 = vmatprep.subr.bf16.mxu0 %v1249
    %1772 = vmatpush1.bf16.msra.mxu0 %v1248
    %1773 = vmatprep.mubr.bf16.mxu0 %v73
    %1774 = vmatmul.mubr.bf16.gmra.mrb[0].mxu0 %v72
    %v1775 = vpop.f32.mrb[0].mxu0
    %v1776 = vadd.f32 %v341, %v1775
    %v1777 = vpop.f32.mrb[0].mxu0
    %v1778 = vadd.f32 %v345, %v1777
    %v1779 = vpop.f32.mrb[0].mxu0
    %v1780 = vpop.f32.mrb[0].mxu0
    %1781 = vdwg.mxu0
    %1782 = vmatprep.subr.bf16.mxu0 %v1257
    %1783 = vmatpush1.bf16.msra.mxu0 %v1256
    %1784 = vmatprep.subr.bf16.mxu0 %v1265
    %1785 = vmatpush1.bf16.msra.mxu0 %v1264
    %1786 = vmatprep.subr.bf16.mxu0 %v1273
    %1787 = vmatpush1.bf16.msra.mxu0 %v1272
    %1788 = vmatprep.subr.bf16.mxu0 %v1281
    %1789 = vmatpush1.bf16.msra.mxu0 %v1280
    %1790 = vmatprep.subr.bf16.mxu0 %v1289
    %1791 = vmatpush1.bf16.msra.mxu0 %v1288
    %1792 = vmatprep.subr.bf16.mxu0 %v1297
    %1793 = vmatpush1.bf16.msra.mxu0 %v1296
    %1794 = vmatprep.subr.bf16.mxu0 %v1305
    %1795 = vmatpush1.bf16.msra.mxu0 %v1304
    %1796 = vmatprep.subr.bf16.mxu0 %v1313
    %1797 = vmatpush1.bf16.msra.mxu0 %v1312
    %1798 = vmatprep.subr.bf16.mxu0 %v1321
    %1799 = vmatpush1.bf16.msra.mxu0 %v1320
    %1800 = vmatprep.subr.bf16.mxu0 %v1329
    %1801 = vmatpush1.bf16.msra.mxu0 %v1328
    %1802 = vmatprep.subr.bf16.mxu0 %v1337
    %1803 = vmatpush1.bf16.msra.mxu0 %v1336
    %1804 = vmatprep.subr.bf16.mxu0 %v1345
    %1805 = vmatpush1.bf16.msra.mxu0 %v1344
    %1806 = vmatprep.subr.bf16.mxu0 %v1353
    %1807 = vmatpush1.bf16.msra.mxu0 %v1352
    %1808 = vmatprep.subr.bf16.mxu0 %v1361
    %1809 = vmatpush1.bf16.msra.mxu0 %v1360
    %1810 = vmatprep.subr.bf16.mxu0 %v1369
    %1811 = vmatpush1.bf16.msra.mxu0 %v1368
    %1812 = vmatprep.subr.bf16.mxu0 %v1645
    %1813 = vmatpush1.bf16.msra.mxu0 %v1642
    %1814 = vmatprep.mubr.bf16.mxu0 %v1632
    %1815 = vmatmul.mubr.bf16.gmra.mrb[0].mxu0 %v74
    %v1816 = vpop.f32.mrb[0].mxu0
    %v1817 = vadd.f32 %v1776, %v1816
    %v1818 = vpop.f32.mrb[0].mxu0
    %v1819 = vadd.f32 %v1778, %v1818
    %v1820 = vpop.f32.mrb[0].mxu0
    %v1821 = vpop.f32.mrb[0].mxu0
    %1822 = vdwg.mxu0
    %1823 = vmatprep.subr.bf16.mxu0 %v1131
    %1824 = vmatpush1.bf16.msra.mxu0 %v1130
    %1825 = vmatprep.subr.bf16.mxu0 %v1139
    %1826 = vmatpush1.bf16.msra.mxu0 %v1138
    %1827 = vmatprep.subr.bf16.mxu0 %v1147
    %1828 = vmatpush1.bf16.msra.mxu0 %v1146
    %1829 = vmatprep.subr.bf16.mxu0 %v1155
    %1830 = vmatpush1.bf16.msra.mxu0 %v1154
    %1831 = vmatprep.subr.bf16.mxu0 %v1163
    %1832 = vmatpush1.bf16.msra.mxu0 %v1162
    %1833 = vmatprep.subr.bf16.mxu0 %v1171
    %1834 = vmatpush1.bf16.msra.mxu0 %v1170
    %1835 = vmatprep.subr.bf16.mxu0 %v1179
    %1836 = vmatpush1.bf16.msra.mxu0 %v1178
    %1837 = vmatprep.subr.bf16.mxu0 %v1187
    %1838 = vmatpush1.bf16.msra.mxu0 %v1186
    %1839 = vmatprep.subr.bf16.mxu0 %v1195
    %1840 = vmatpush1.bf16.msra.mxu0 %v1194
    %1841 = vmatprep.subr.bf16.mxu0 %v1203
    %1842 = vmatpush1.bf16.msra.mxu0 %v1202
    %1843 = vmatprep.subr.bf16.mxu0 %v1211
    %1844 = vmatpush1.bf16.msra.mxu0 %v1210
    %1845 = vmatprep.subr.bf16.mxu0 %v1219
    %1846 = vmatpush1.bf16.msra.mxu0 %v1218
    %1847 = vmatprep.subr.bf16.mxu0 %v1227
    %1848 = vmatpush1.bf16.msra.mxu0 %v1226
    %1849 = vmatprep.subr.bf16.mxu0 %v1235
    %1850 = vmatpush1.bf16.msra.mxu0 %v1234
    %1851 = vmatprep.subr.bf16.mxu0 %v1243
    %1852 = vmatpush1.bf16.msra.mxu0 %v1242
    %1853 = vmatprep.subr.bf16.mxu0 %v1251
    %1854 = vmatpush1.bf16.msra.mxu0 %v1250
    %1855 = vmatprep.mubr.bf16.mxu0 %v73
    %1856 = vmatmul.mubr.bf16.gmra.mrb[0].mxu0 %v72
    %v1857 = vpop.f32.mrb[0].mxu0
    %v1858 = vadd.f32 %v349, %v1857
    %v1859 = vpop.f32.mrb[0].mxu0
    %v1860 = vadd.f32 %v353, %v1859
    %v1861 = vpop.f32.mrb[0].mxu0
    %v1862 = vpop.f32.mrb[0].mxu0
    %1863 = vdwg.mxu0
    %1864 = vmatprep.subr.bf16.mxu0 %v1259
    %1865 = vmatpush1.bf16.msra.mxu0 %v1258
    %1866 = vmatprep.subr.bf16.mxu0 %v1267
    %1867 = vmatpush1.bf16.msra.mxu0 %v1266
    %1868 = vmatprep.subr.bf16.mxu0 %v1275
    %1869 = vmatpush1.bf16.msra.mxu0 %v1274
    %1870 = vmatprep.subr.bf16.mxu0 %v1283
    %1871 = vmatpush1.bf16.msra.mxu0 %v1282
    %1872 = vmatprep.subr.bf16.mxu0 %v1291
    %1873 = vmatpush1.bf16.msra.mxu0 %v1290
    %1874 = vmatprep.subr.bf16.mxu0 %v1299
    %1875 = vmatpush1.bf16.msra.mxu0 %v1298
    %1876 = vmatprep.subr.bf16.mxu0 %v1307
    %1877 = vmatpush1.bf16.msra.mxu0 %v1306
    %1878 = vmatprep.subr.bf16.mxu0 %v1315
    %1879 = vmatpush1.bf16.msra.mxu0 %v1314
    %1880 = vmatprep.subr.bf16.mxu0 %v1323
    %1881 = vmatpush1.bf16.msra.mxu0 %v1322
    %1882 = vmatprep.subr.bf16.mxu0 %v1331
    %1883 = vmatpush1.bf16.msra.mxu0 %v1330
    %1884 = vmatprep.subr.bf16.mxu0 %v1339
    %1885 = vmatpush1.bf16.msra.mxu0 %v1338
    %1886 = vmatprep.subr.bf16.mxu0 %v1347
    %1887 = vmatpush1.bf16.msra.mxu0 %v1346
    %1888 = vmatprep.subr.bf16.mxu0 %v1355
    %1889 = vmatpush1.bf16.msra.mxu0 %v1354
    %1890 = vmatprep.subr.bf16.mxu0 %v1363
    %1891 = vmatpush1.bf16.msra.mxu0 %v1362
    %1892 = vmatprep.subr.bf16.mxu0 %v1371
    %1893 = vmatpush1.bf16.msra.mxu0 %v1370
    %1894 = vmatprep.subr.bf16.mxu0 %v1651
    %1895 = vmatpush1.bf16.msra.mxu0 %v1648
    %1896 = vmatprep.mubr.bf16.mxu0 %v1632
    %1897 = vmatmul.mubr.bf16.gmra.mrb[0].mxu0 %v74
    %v1898 = vpop.f32.mrb[0].mxu0
    %v1899 = vadd.f32 %v1858, %v1898
    %v1900 = vpop.f32.mrb[0].mxu0
    %v1901 = vadd.f32 %v1860, %v1900
    %v1902 = vpop.f32.mrb[0].mxu0
    %v1903 = vpop.f32.mrb[0].mxu0
    %1904 = vdwg.mxu0
    %1905 = vmatprep.subr.bf16.mxu0 %v1133
    %1906 = vmatpush1.bf16.msra.mxu0 %v1132
    %1907 = vmatprep.subr.bf16.mxu0 %v1141
    %1908 = vmatpush1.bf16.msra.mxu0 %v1140
    %1909 = vmatprep.subr.bf16.mxu0 %v1149
    %1910 = vmatpush1.bf16.msra.mxu0 %v1148
    %1911 = vmatprep.subr.bf16.mxu0 %v1157
    %1912 = vmatpush1.bf16.msra.mxu0 %v1156
    %1913 = vmatprep.subr.bf16.mxu0 %v1165
    %1914 = vmatpush1.bf16.msra.mxu0 %v1164
    %1915 = vmatprep.subr.bf16.mxu0 %v1173
    %1916 = vmatpush1.bf16.msra.mxu0 %v1172
    %1917 = vmatprep.subr.bf16.mxu0 %v1181
    %1918 = vmatpush1.bf16.msra.mxu0 %v1180
    %1919 = vmatprep.subr.bf16.mxu0 %v1189
    %1920 = vmatpush1.bf16.msra.mxu0 %v1188
    %1921 = vmatprep.subr.bf16.mxu0 %v1197
    %1922 = vmatpush1.bf16.msra.mxu0 %v1196
    %1923 = vmatprep.subr.bf16.mxu0 %v1205
    %1924 = vmatpush1.bf16.msra.mxu0 %v1204
    %1925 = vmatprep.subr.bf16.mxu0 %v1213
    %1926 = vmatpush1.bf16.msra.mxu0 %v1212
    %1927 = vmatprep.subr.bf16.mxu0 %v1221
    %1928 = vmatpush1.bf16.msra.mxu0 %v1220
    %1929 = vmatprep.subr.bf16.mxu0 %v1229
    %1930 = vmatpush1.bf16.msra.mxu0 %v1228
    %1931 = vmatprep.subr.bf16.mxu0 %v1237
    %1932 = vmatpush1.bf16.msra.mxu0 %v1236
    %1933 = vmatprep.subr.bf16.mxu0 %v1245
    %1934 = vmatpush1.bf16.msra.mxu0 %v1244
    %1935 = vmatprep.subr.bf16.mxu0 %v1253
    %1936 = vmatpush1.bf16.msra.mxu0 %v1252
    %1937 = vmatprep.mubr.bf16.mxu0 %v73
    %1938 = vmatmul.mubr.bf16.gmra.mrb[0].mxu0 %v72
    %v1939 = vpop.f32.mrb[0].mxu0
    %v1940 = vadd.f32 %v357, %v1939
    %v1941 = vpop.f32.mrb[0].mxu0
    %v1942 = vadd.f32 %v361, %v1941
    %v1943 = vpop.f32.mrb[0].mxu0
    %v1944 = vpop.f32.mrb[0].mxu0
    %1945 = vdwg.mxu0
    %1946 = vmatprep.subr.bf16.mxu0 %v1261
    %1947 = vmatpush1.bf16.msra.mxu0 %v1260
    %1948 = vmatprep.subr.bf16.mxu0 %v1269
    %1949 = vmatpush1.bf16.msra.mxu0 %v1268
    %1950 = vmatprep.subr.bf16.mxu0 %v1277
    %1951 = vmatpush1.bf16.msra.mxu0 %v1276
    %1952 = vmatprep.subr.bf16.mxu0 %v1285
    %1953 = vmatpush1.bf16.msra.mxu0 %v1284
    %1954 = vmatprep.subr.bf16.mxu0 %v1293
    %1955 = vmatpush1.bf16.msra.mxu0 %v1292
    %1956 = vmatprep.subr.bf16.mxu0 %v1301
    %1957 = vmatpush1.bf16.msra.mxu0 %v1300
    %1958 = vmatprep.subr.bf16.mxu0 %v1309
    %1959 = vmatpush1.bf16.msra.mxu0 %v1308
    %1960 = vmatprep.subr.bf16.mxu0 %v1317
    %1961 = vmatpush1.bf16.msra.mxu0 %v1316
    %1962 = vmatprep.subr.bf16.mxu0 %v1325
    %1963 = vmatpush1.bf16.msra.mxu0 %v1324
    %1964 = vmatprep.subr.bf16.mxu0 %v1333
    %1965 = vmatpush1.bf16.msra.mxu0 %v1332
    %1966 = vmatprep.subr.bf16.mxu0 %v1341
    %1967 = vmatpush1.bf16.msra.mxu0 %v1340
    %1968 = vmatprep.subr.bf16.mxu0 %v1349
    %1969 = vmatpush1.bf16.msra.mxu0 %v1348
    %1970 = vmatprep.subr.bf16.mxu0 %v1357
    %1971 = vmatpush1.bf16.msra.mxu0 %v1356
    %1972 = vmatprep.subr.bf16.mxu0 %v1365
    %1973 = vmatpush1.bf16.msra.mxu0 %v1364
    %1974 = vmatprep.subr.bf16.mxu0 %v1373
    %1975 = vmatpush1.bf16.msra.mxu0 %v1372
    %1976 = vmatprep.subr.bf16.mxu0 %v1657
    %1977 = vmatpush1.bf16.msra.mxu0 %v1654
    %1978 = vmatprep.mubr.bf16.mxu0 %v1632
    %1979 = vmatmul.mubr.bf16.gmra.mrb[0].mxu0 %v74
    %v1980 = vpop.f32.mrb[0].mxu0
    %v1981 = vadd.f32 %v1940, %v1980
    %v1982 = vpop.f32.mrb[0].mxu0
    %v1983 = vadd.f32 %v1942, %v1982
    %v1984 = vpop.f32.mrb[0].mxu0
    %v1985 = vpop.f32.mrb[0].mxu0
    %1986 = vdwg.mxu0
    %v1987 = vmax.f32 %v1735, 0.0
    %v1988 = vmax.f32 %v1737, 0.0
    %v1989 = vmax.f32 %v1817, 0.0
    %v1990 = vmax.f32 %v1819, 0.0
    %v1991 = vmax.f32 %v1899, 0.0
    %v1992 = vmax.f32 %v1901, 0.0
    %v1993 = vmax.f32 %v1981, 0.0
    %v1994 = vmax.f32 %v1983, 0.0
    %v1995 = vpack.c.bf16 %v1987, %v1987
    %v1996 = vpack.c.bf16 %v1988, %v1988
    %v1997 = vpack.c.bf16 %v1989, %v1989
    %v1998 = vpack.c.bf16 %v1990, %v1990
    %v1999 = vpack.c.bf16 %v1991, %v1991
    %v2000 = vpack.c.bf16 %v1992, %v1992
    %v2001 = vpack.c.bf16 %v1993, %v1993
    %v2002 = vpack.c.bf16 %v1994, %v1994
    %v2003 = vld [vmem:[#allocation8] sm:$0xff]
    %v2004 = vld [vmem:[#allocation8 + $0x8] sm:$0xff]
    %v2005 = vld [vmem:[#allocation8 + $0x10] sm:$0xff]
    %v2006 = vld [vmem:[#allocation8 + $0x18] sm:$0xff]
    %v2007 = vld [vmem:[#allocation8 + $0x20] sm:$0xff]
    %v2008 = vld [vmem:[#allocation8 + $0x28] sm:$0xff]
    %v2009 = vld [vmem:[#allocation8 + $0x30] sm:$0xff]
    %v2010 = vld [vmem:[#allocation8 + $0x38] sm:$0xff]
    %v2011 = vld [vmem:[#allocation8 + $0x40] sm:$0xff]
    %v2012 = vld [vmem:[#allocation8 + $0x48] sm:$0xff]
    %v2013 = vld [vmem:[#allocation8 + $0x50] sm:$0xff]
    %v2014 = vld [vmem:[#allocation8 + $0x58] sm:$0xff]
    %v2015 = vld [vmem:[#allocation8 + $0x60] sm:$0xff]
    %v2016 = vld [vmem:[#allocation8 + $0x68] sm:$0xff]
    %v2017 = vld [vmem:[#allocation8 + $0x70] sm:$0xff]
    %v2018 = vld [vmem:[#allocation8 + $0x78] sm:$0xff]
    %v2019 = vld [vmem:[#allocation8 + $0x80] sm:$0xff]
    %v2020 = vld [vmem:[#allocation8 + $0x88] sm:$0xff]
    %v2021 = vld [vmem:[#allocation8 + $0x90] sm:$0xff]
    %v2022 = vld [vmem:[#allocation8 + $0x98] sm:$0xff]
    %v2023 = vld [vmem:[#allocation8 + $0xa0] sm:$0xff]
    %v2024 = vld [vmem:[#allocation8 + $0xa8] sm:$0xff]
    %v2025 = vld [vmem:[#allocation8 + $0xb0] sm:$0xff]
    %v2026 = vld [vmem:[#allocation8 + $0xb8] sm:$0xff]
    %v2027 = vld [vmem:[#allocation8 + $0xc0] sm:$0xff]
    %v2028 = vld [vmem:[#allocation8 + $0xc8] sm:$0xff]
    %v2029 = vld [vmem:[#allocation8 + $0xd0] sm:$0xff]
    %v2030 = vld [vmem:[#allocation8 + $0xd8] sm:$0xff]
    %v2031 = vld [vmem:[#allocation8 + $0xe0] sm:$0xff]
    %v2032 = vld [vmem:[#allocation8 + $0xe8] sm:$0xff]
    %v2033 = vld [vmem:[#allocation8 + $0xf0] sm:$0xff]
    %v2034 = vld [vmem:[#allocation8 + $0xf8] sm:$0xff]
    %v2035 = vld [vmem:[#allocation8 + $0x100] sm:$0xff]
    %v2036 = vld [vmem:[#allocation8 + $0x108] sm:$0xff]
    %v2037 = vld [vmem:[#allocation8 + $0x110] sm:$0xff]
    %v2038 = vld [vmem:[#allocation8 + $0x118] sm:$0xff]
    %v2039 = vld [vmem:[#allocation8 + $0x120] sm:$0xff]
    %v2040 = vld [vmem:[#allocation8 + $0x128] sm:$0xff]
    %v2041 = vld [vmem:[#allocation8 + $0x130] sm:$0xff]
    %v2042 = vld [vmem:[#allocation8 + $0x138] sm:$0xff]
    %v2043 = vld [vmem:[#allocation8 + $0x140] sm:$0xff]
    %v2044 = vld [vmem:[#allocation8 + $0x148] sm:$0xff]
    %v2045 = vld [vmem:[#allocation8 + $0x150] sm:$0xff]
    %v2046 = vld [vmem:[#allocation8 + $0x158] sm:$0xff]
    %v2047 = vld [vmem:[#allocation8 + $0x160] sm:$0xff]
    %v2048 = vld [vmem:[#allocation8 + $0x168] sm:$0xff]
    %v2049 = vld [vmem:[#allocation8 + $0x170] sm:$0xff]
    %v2050 = vld [vmem:[#allocation8 + $0x178] sm:$0xff]
    %v2051 = vld [vmem:[#allocation8 + $0x180] sm:$0xff]
    %v2052 = vld [vmem:[#allocation8 + $0x188] sm:$0xff]
    %v2053 = vld [vmem:[#allocation8 + $0x190] sm:$0xff]
    %v2054 = vld [vmem:[#allocation8 + $0x198] sm:$0xff]
    %v2055 = vld [vmem:[#allocation8 + $0x1a0] sm:$0xff]
    %v2056 = vld [vmem:[#allocation8 + $0x1a8] sm:$0xff]
    %v2057 = vld [vmem:[#allocation8 + $0x1b0] sm:$0xff]
    %v2058 = vld [vmem:[#allocation8 + $0x1b8] sm:$0xff]
    %v2059 = vld [vmem:[#allocation8 + $0x1c0] sm:$0xff]
    %v2060 = vld [vmem:[#allocation8 + $0x1c8] sm:$0xff]
    %v2061 = vld [vmem:[#allocation8 + $0x1d0] sm:$0xff]
    %v2062 = vld [vmem:[#allocation8 + $0x1d8] sm:$0xff]
    %v2063 = vld [vmem:[#allocation8 + $0x1e0] sm:$0xff]
    %v2064 = vld [vmem:[#allocation8 + $0x1e8] sm:$0xff]
    %v2065 = vld [vmem:[#allocation8 + $0x1f0] sm:$0xff]
    %v2066 = vld [vmem:[#allocation8 + $0x1f8] sm:$0xff]
    %v2067 = vld [vmem:[#allocation8 + $0x200] sm:$0xff]
    %v2068 = vld [vmem:[#allocation8 + $0x208] sm:$0xff]
    %v2069 = vld [vmem:[#allocation8 + $0x210] sm:$0xff]
    %v2070 = vld [vmem:[#allocation8 + $0x218] sm:$0xff]
    %v2071 = vld [vmem:[#allocation8 + $0x220] sm:$0xff]
    %v2072 = vld [vmem:[#allocation8 + $0x228] sm:$0xff]
    %v2073 = vld [vmem:[#allocation8 + $0x230] sm:$0xff]
    %v2074 = vld [vmem:[#allocation8 + $0x238] sm:$0xff]
    %v2075 = vld [vmem:[#allocation8 + $0x240] sm:$0xff]
    %v2076 = vld [vmem:[#allocation8 + $0x248] sm:$0xff]
    %v2077 = vld [vmem:[#allocation8 + $0x250] sm:$0xff]
    %v2078 = vld [vmem:[#allocation8 + $0x258] sm:$0xff]
    %v2079 = vld [vmem:[#allocation8 + $0x260] sm:$0xff]
    %v2080 = vld [vmem:[#allocation8 + $0x268] sm:$0xff]
    %v2081 = vld [vmem:[#allocation8 + $0x270] sm:$0xff]
    %v2082 = vld [vmem:[#allocation8 + $0x278] sm:$0xff]
    %v2083 = vld [vmem:[#allocation8 + $0x280] sm:$0xff]
    %v2084 = vld [vmem:[#allocation8 + $0x288] sm:$0xff]
    %v2085 = vld [vmem:[#allocation8 + $0x290] sm:$0xff]
    %v2086 = vld [vmem:[#allocation8 + $0x298] sm:$0xff]
    %v2087 = vld [vmem:[#allocation8 + $0x2a0] sm:$0xff]
    %v2088 = vld [vmem:[#allocation8 + $0x2a8] sm:$0xff]
    %v2089 = vld [vmem:[#allocation8 + $0x2b0] sm:$0xff]
    %v2090 = vld [vmem:[#allocation8 + $0x2b8] sm:$0xff]
    %v2091 = vld [vmem:[#allocation8 + $0x2c0] sm:$0xff]
    %v2092 = vld [vmem:[#allocation8 + $0x2c8] sm:$0xff]
    %v2093 = vld [vmem:[#allocation8 + $0x2d0] sm:$0xff]
    %v2094 = vld [vmem:[#allocation8 + $0x2d8] sm:$0xff]
    %v2095 = vld [vmem:[#allocation8 + $0x2e0] sm:$0xff]
    %v2096 = vld [vmem:[#allocation8 + $0x2e8] sm:$0xff]
    %v2097 = vld [vmem:[#allocation8 + $0x2f0] sm:$0xff]
    %v2098 = vld [vmem:[#allocation8 + $0x2f8] sm:$0xff]
    %v2099 = vld [vmem:[#allocation8 + $0x300] sm:$0xff]
    %v2100 = vld [vmem:[#allocation8 + $0x308] sm:$0xff]
    %v2101 = vld [vmem:[#allocation8 + $0x310] sm:$0xff]
    %v2102 = vld [vmem:[#allocation8 + $0x318] sm:$0xff]
    %v2103 = vld [vmem:[#allocation8 + $0x320] sm:$0xff]
    %v2104 = vld [vmem:[#allocation8 + $0x328] sm:$0xff]
    %v2105 = vld [vmem:[#allocation8 + $0x330] sm:$0xff]
    %v2106 = vld [vmem:[#allocation8 + $0x338] sm:$0xff]
    %v2107 = vld [vmem:[#allocation8 + $0x340] sm:$0xff]
    %v2108 = vld [vmem:[#allocation8 + $0x348] sm:$0xff]
    %v2109 = vld [vmem:[#allocation8 + $0x350] sm:$0xff]
    %v2110 = vld [vmem:[#allocation8 + $0x358] sm:$0xff]
    %v2111 = vld [vmem:[#allocation8 + $0x360] sm:$0xff]
    %v2112 = vld [vmem:[#allocation8 + $0x368] sm:$0xff]
    %v2113 = vld [vmem:[#allocation8 + $0x370] sm:$0xff]
    %v2114 = vld [vmem:[#allocation8 + $0x378] sm:$0xff]
    %v2115 = vld [vmem:[#allocation8 + $0x380] sm:$0xff]
    %v2116 = vld [vmem:[#allocation8 + $0x388] sm:$0xff]
    %v2117 = vld [vmem:[#allocation8 + $0x390] sm:$0xff]
    %v2118 = vld [vmem:[#allocation8 + $0x398] sm:$0xff]
    %v2119 = vld [vmem:[#allocation8 + $0x3a0] sm:$0xff]
    %v2120 = vld [vmem:[#allocation8 + $0x3a8] sm:$0xff]
    %v2121 = vld [vmem:[#allocation8 + $0x3b0] sm:$0xff]
    %v2122 = vld [vmem:[#allocation8 + $0x3b8] sm:$0xff]
    %v2123 = vld [vmem:[#allocation8 + $0x3c0] sm:$0xff]
    %v2124 = vld [vmem:[#allocation8 + $0x3c8] sm:$0xff]
    %v2125 = vld [vmem:[#allocation8 + $0x3d0] sm:$0xff]
    %v2126 = vld [vmem:[#allocation8 + $0x3d8] sm:$0xff]
    %v2127 = vld [vmem:[#allocation8 + $0x3e0] sm:$0xff]
    %v2128 = vld [vmem:[#allocation8 + $0x3e8] sm:$0xff]
    %v2129 = vld [vmem:[#allocation8 + $0x3f0] sm:$0xff]
    %v2130 = vld [vmem:[#allocation8 + $0x3f8] sm:$0xff]
    %v2131 = vld [vmem:[%s4] sm:$0x3]
    %v2133 = vlaneseq
    %v2134 = vshrl.u32 %v2133, 7
    %v2135 = vsub.s32 0, %v2134
    %v2136 = vrot.slane %v2131, %v2135
    %v2137 = vlaneseq
    %v2138 = vshrl.u32 %v2137, 7
    %v2139 = vsub.s32 1, %v2138
    %v2140 = vrot.slane %v2131, %v2139
    %v2271 = vunpack.c.l.b16 %v2003
    %v2272 = vunpack.c.h.b16 %v2003
    %v2273 = vunpack.c.l.b16 %v2004
    %v2274 = vunpack.c.h.b16 %v2004
    %v2275 = vunpack.c.l.b16 %v2005
    %v2276 = vunpack.c.h.b16 %v2005
    %v2277 = vunpack.c.l.b16 %v2006
    %v2278 = vunpack.c.h.b16 %v2006
    %v2279 = vunpack.c.l.b16 %v2007
    %v2280 = vunpack.c.h.b16 %v2007
    %v2281 = vunpack.c.l.b16 %v2008
    %v2282 = vunpack.c.h.b16 %v2008
    %v2283 = vunpack.c.l.b16 %v2009
    %v2284 = vunpack.c.h.b16 %v2009
    %v2285 = vunpack.c.l.b16 %v2010
    %v2286 = vunpack.c.h.b16 %v2010
    %v2287 = vunpack.c.l.b16 %v2011
    %v2288 = vunpack.c.h.b16 %v2011
    %v2289 = vunpack.c.l.b16 %v2012
    %v2290 = vunpack.c.h.b16 %v2012
    %v2291 = vunpack.c.l.b16 %v2013
    %v2292 = vunpack.c.h.b16 %v2013
    %v2293 = vunpack.c.l.b16 %v2014
    %v2294 = vunpack.c.h.b16 %v2014
    %v2295 = vunpack.c.l.b16 %v2015
    %v2296 = vunpack.c.h.b16 %v2015
    %v2297 = vunpack.c.l.b16 %v2016
    %v2298 = vunpack.c.h.b16 %v2016
    %v2299 = vunpack.c.l.b16 %v2017
    %v2300 = vunpack.c.h.b16 %v2017
    %v2301 = vunpack.c.l.b16 %v2018
    %v2302 = vunpack.c.h.b16 %v2018
    %v2303 = vunpack.c.l.b16 %v2019
    %v2304 = vunpack.c.h.b16 %v2019
    %v2305 = vunpack.c.l.b16 %v2020
    %v2306 = vunpack.c.h.b16 %v2020
    %v2307 = vunpack.c.l.b16 %v2021
    %v2308 = vunpack.c.h.b16 %v2021
    %v2309 = vunpack.c.l.b16 %v2022
    %v2310 = vunpack.c.h.b16 %v2022
    %v2311 = vunpack.c.l.b16 %v2023
    %v2312 = vunpack.c.h.b16 %v2023
    %v2313 = vunpack.c.l.b16 %v2024
    %v2314 = vunpack.c.h.b16 %v2024
    %v2315 = vunpack.c.l.b16 %v2025
    %v2316 = vunpack.c.h.b16 %v2025
    %v2317 = vunpack.c.l.b16 %v2026
    %v2318 = vunpack.c.h.b16 %v2026
    %v2319 = vunpack.c.l.b16 %v2027
    %v2320 = vunpack.c.h.b16 %v2027
    %v2321 = vunpack.c.l.b16 %v2028
    %v2322 = vunpack.c.h.b16 %v2028
    %v2323 = vunpack.c.l.b16 %v2029
    %v2324 = vunpack.c.h.b16 %v2029
    %v2325 = vunpack.c.l.b16 %v2030
    %v2326 = vunpack.c.h.b16 %v2030
    %v2327 = vunpack.c.l.b16 %v2031
    %v2328 = vunpack.c.h.b16 %v2031
    %v2329 = vunpack.c.l.b16 %v2032
    %v2330 = vunpack.c.h.b16 %v2032
    %v2331 = vunpack.c.l.b16 %v2033
    %v2332 = vunpack.c.h.b16 %v2033
    %v2333 = vunpack.c.l.b16 %v2034
    %v2334 = vunpack.c.h.b16 %v2034
    %v2335 = vunpack.c.l.b16 %v2035
    %v2336 = vunpack.c.h.b16 %v2035
    %v2337 = vunpack.c.l.b16 %v2036
    %v2338 = vunpack.c.h.b16 %v2036
    %v2339 = vunpack.c.l.b16 %v2037
    %v2340 = vunpack.c.h.b16 %v2037
    %v2341 = vunpack.c.l.b16 %v2038
    %v2342 = vunpack.c.h.b16 %v2038
    %v2343 = vunpack.c.l.b16 %v2039
    %v2344 = vunpack.c.h.b16 %v2039
    %v2345 = vunpack.c.l.b16 %v2040
    %v2346 = vunpack.c.h.b16 %v2040
    %v2347 = vunpack.c.l.b16 %v2041
    %v2348 = vunpack.c.h.b16 %v2041
    %v2349 = vunpack.c.l.b16 %v2042
    %v2350 = vunpack.c.h.b16 %v2042
    %v2351 = vunpack.c.l.b16 %v2043
    %v2352 = vunpack.c.h.b16 %v2043
    %v2353 = vunpack.c.l.b16 %v2044
    %v2354 = vunpack.c.h.b16 %v2044
    %v2355 = vunpack.c.l.b16 %v2045
    %v2356 = vunpack.c.h.b16 %v2045
    %v2357 = vunpack.c.l.b16 %v2046
    %v2358 = vunpack.c.h.b16 %v2046
    %v2359 = vunpack.c.l.b16 %v2047
    %v2360 = vunpack.c.h.b16 %v2047
    %v2361 = vunpack.c.l.b16 %v2048
    %v2362 = vunpack.c.h.b16 %v2048
    %v2363 = vunpack.c.l.b16 %v2049
    %v2364 = vunpack.c.h.b16 %v2049
    %v2365 = vunpack.c.l.b16 %v2050
    %v2366 = vunpack.c.h.b16 %v2050
    %v2367 = vunpack.c.l.b16 %v2051
    %v2368 = vunpack.c.h.b16 %v2051
    %v2369 = vunpack.c.l.b16 %v2052
    %v2370 = vunpack.c.h.b16 %v2052
    %v2371 = vunpack.c.l.b16 %v2053
    %v2372 = vunpack.c.h.b16 %v2053
    %v2373 = vunpack.c.l.b16 %v2054
    %v2374 = vunpack.c.h.b16 %v2054
    %v2375 = vunpack.c.l.b16 %v2055
    %v2376 = vunpack.c.h.b16 %v2055
    %v2377 = vunpack.c.l.b16 %v2056
    %v2378 = vunpack.c.h.b16 %v2056
    %v2379 = vunpack.c.l.b16 %v2057
    %v2380 = vunpack.c.h.b16 %v2057
    %v2381 = vunpack.c.l.b16 %v2058
    %v2382 = vunpack.c.h.b16 %v2058
    %v2383 = vunpack.c.l.b16 %v2059
    %v2384 = vunpack.c.h.b16 %v2059
    %v2385 = vunpack.c.l.b16 %v2060
    %v2386 = vunpack.c.h.b16 %v2060
    %v2387 = vunpack.c.l.b16 %v2061
    %v2388 = vunpack.c.h.b16 %v2061
    %v2389 = vunpack.c.l.b16 %v2062
    %v2390 = vunpack.c.h.b16 %v2062
    %v2391 = vunpack.c.l.b16 %v2063
    %v2392 = vunpack.c.h.b16 %v2063
    %v2393 = vunpack.c.l.b16 %v2064
    %v2394 = vunpack.c.h.b16 %v2064
    %v2395 = vunpack.c.l.b16 %v2065
    %v2396 = vunpack.c.h.b16 %v2065
    %v2397 = vunpack.c.l.b16 %v2066
    %v2398 = vunpack.c.h.b16 %v2066
    %v2399 = vunpack.c.l.b16 %v2067
    %v2400 = vunpack.c.h.b16 %v2067
    %v2401 = vunpack.c.l.b16 %v2068
    %v2402 = vunpack.c.h.b16 %v2068
    %v2403 = vunpack.c.l.b16 %v2069
    %v2404 = vunpack.c.h.b16 %v2069
    %v2405 = vunpack.c.l.b16 %v2070
    %v2406 = vunpack.c.h.b16 %v2070
    %v2407 = vunpack.c.l.b16 %v2071
    %v2408 = vunpack.c.h.b16 %v2071
    %v2409 = vunpack.c.l.b16 %v2072
    %v2410 = vunpack.c.h.b16 %v2072
    %v2411 = vunpack.c.l.b16 %v2073
    %v2412 = vunpack.c.h.b16 %v2073
    %v2413 = vunpack.c.l.b16 %v2074
    %v2414 = vunpack.c.h.b16 %v2074
    %v2415 = vunpack.c.l.b16 %v2075
    %v2416 = vunpack.c.h.b16 %v2075
    %v2417 = vunpack.c.l.b16 %v2076
    %v2418 = vunpack.c.h.b16 %v2076
    %v2419 = vunpack.c.l.b16 %v2077
    %v2420 = vunpack.c.h.b16 %v2077
    %v2421 = vunpack.c.l.b16 %v2078
    %v2422 = vunpack.c.h.b16 %v2078
    %v2423 = vunpack.c.l.b16 %v2079
    %v2424 = vunpack.c.h.b16 %v2079
    %v2425 = vunpack.c.l.b16 %v2080
    %v2426 = vunpack.c.h.b16 %v2080
    %v2427 = vunpack.c.l.b16 %v2081
    %v2428 = vunpack.c.h.b16 %v2081
    %v2429 = vunpack.c.l.b16 %v2082
    %v2430 = vunpack.c.h.b16 %v2082
    %v2431 = vunpack.c.l.b16 %v2083
    %v2432 = vunpack.c.h.b16 %v2083
    %v2433 = vunpack.c.l.b16 %v2084
    %v2434 = vunpack.c.h.b16 %v2084
    %v2435 = vunpack.c.l.b16 %v2085
    %v2436 = vunpack.c.h.b16 %v2085
    %v2437 = vunpack.c.l.b16 %v2086
    %v2438 = vunpack.c.h.b16 %v2086
    %v2439 = vunpack.c.l.b16 %v2087
    %v2440 = vunpack.c.h.b16 %v2087
    %v2441 = vunpack.c.l.b16 %v2088
    %v2442 = vunpack.c.h.b16 %v2088
    %v2443 = vunpack.c.l.b16 %v2089
    %v2444 = vunpack.c.h.b16 %v2089
    %v2445 = vunpack.c.l.b16 %v2090
    %v2446 = vunpack.c.h.b16 %v2090
    %v2447 = vunpack.c.l.b16 %v2091
    %v2448 = vunpack.c.h.b16 %v2091
    %v2449 = vunpack.c.l.b16 %v2092
    %v2450 = vunpack.c.h.b16 %v2092
    %v2451 = vunpack.c.l.b16 %v2093
    %v2452 = vunpack.c.h.b16 %v2093
    %v2453 = vunpack.c.l.b16 %v2094
    %v2454 = vunpack.c.h.b16 %v2094
    %v2455 = vunpack.c.l.b16 %v2095
    %v2456 = vunpack.c.h.b16 %v2095
    %v2457 = vunpack.c.l.b16 %v2096
    %v2458 = vunpack.c.h.b16 %v2096
    %v2459 = vunpack.c.l.b16 %v2097
    %v2460 = vunpack.c.h.b16 %v2097
    %v2461 = vunpack.c.l.b16 %v2098
    %v2462 = vunpack.c.h.b16 %v2098
    %v2463 = vunpack.c.l.b16 %v2099
    %v2464 = vunpack.c.h.b16 %v2099
    %v2465 = vunpack.c.l.b16 %v2100
    %v2466 = vunpack.c.h.b16 %v2100
    %v2467 = vunpack.c.l.b16 %v2101
    %v2468 = vunpack.c.h.b16 %v2101
    %v2469 = vunpack.c.l.b16 %v2102
    %v2470 = vunpack.c.h.b16 %v2102
    %v2471 = vunpack.c.l.b16 %v2103
    %v2472 = vunpack.c.h.b16 %v2103
    %v2473 = vunpack.c.l.b16 %v2104
    %v2474 = vunpack.c.h.b16 %v2104
    %v2475 = vunpack.c.l.b16 %v2105
    %v2476 = vunpack.c.h.b16 %v2105
    %v2477 = vunpack.c.l.b16 %v2106
    %v2478 = vunpack.c.h.b16 %v2106
    %v2479 = vunpack.c.l.b16 %v2107
    %v2480 = vunpack.c.h.b16 %v2107
    %v2481 = vunpack.c.l.b16 %v2108
    %v2482 = vunpack.c.h.b16 %v2108
    %v2483 = vunpack.c.l.b16 %v2109
    %v2484 = vunpack.c.h.b16 %v2109
    %v2485 = vunpack.c.l.b16 %v2110
    %v2486 = vunpack.c.h.b16 %v2110
    %v2487 = vunpack.c.l.b16 %v2111
    %v2488 = vunpack.c.h.b16 %v2111
    %v2489 = vunpack.c.l.b16 %v2112
    %v2490 = vunpack.c.h.b16 %v2112
    %v2491 = vunpack.c.l.b16 %v2113
    %v2492 = vunpack.c.h.b16 %v2113
    %v2493 = vunpack.c.l.b16 %v2114
    %v2494 = vunpack.c.h.b16 %v2114
    %v2495 = vunpack.c.l.b16 %v2115
    %v2496 = vunpack.c.h.b16 %v2115
    %v2497 = vunpack.c.l.b16 %v2116
    %v2498 = vunpack.c.h.b16 %v2116
    %v2499 = vunpack.c.l.b16 %v2117
    %v2500 = vunpack.c.h.b16 %v2117
    %v2501 = vunpack.c.l.b16 %v2118
    %v2502 = vunpack.c.h.b16 %v2118
    %v2503 = vunpack.c.l.b16 %v2119
    %v2504 = vunpack.c.h.b16 %v2119
    %v2505 = vunpack.c.l.b16 %v2120
    %v2506 = vunpack.c.h.b16 %v2120
    %v2507 = vunpack.c.l.b16 %v2121
    %v2508 = vunpack.c.h.b16 %v2121
    %v2509 = vunpack.c.l.b16 %v2122
    %v2510 = vunpack.c.h.b16 %v2122
    %v2511 = vunpack.c.l.b16 %v2123
    %v2512 = vunpack.c.h.b16 %v2123
    %v2513 = vunpack.c.l.b16 %v2124
    %v2514 = vunpack.c.h.b16 %v2124
    %v2515 = vunpack.c.l.b16 %v2125
    %v2516 = vunpack.c.h.b16 %v2125
    %v2517 = vunpack.c.l.b16 %v2126
    %v2518 = vunpack.c.h.b16 %v2126
    %v2519 = vunpack.c.l.b16 %v2127
    %v2520 = vunpack.c.h.b16 %v2127
    %v2521 = vunpack.c.l.b16 %v2128
    %v2522 = vunpack.c.h.b16 %v2128
    %v2523 = vunpack.c.l.b16 %v2129
    %v2524 = vunpack.c.h.b16 %v2129
    %v2525 = vunpack.c.l.b16 %v2130
    %v2526 = vunpack.c.h.b16 %v2130
    %v2527 = vpack.c.b16 %v2273, %v2271
    %v2528 = vpack.c.b16 %v2274, %v2272
    %v2529 = vpack.c.b16 %v2277, %v2275
    %v2530 = vpack.c.b16 %v2278, %v2276
    %v2531 = vpack.c.b16 %v2281, %v2279
    %v2532 = vpack.c.b16 %v2282, %v2280
    %v2533 = vpack.c.b16 %v2285, %v2283
    %v2534 = vpack.c.b16 %v2286, %v2284
    %v2535 = vpack.c.b16 %v2289, %v2287
    %v2536 = vpack.c.b16 %v2290, %v2288
    %v2537 = vpack.c.b16 %v2293, %v2291
    %v2538 = vpack.c.b16 %v2294, %v2292
    %v2539 = vpack.c.b16 %v2297, %v2295
    %v2540 = vpack.c.b16 %v2298, %v2296
    %v2541 = vpack.c.b16 %v2301, %v2299
    %v2542 = vpack.c.b16 %v2302, %v2300
    %v2543 = vpack.c.b16 %v2305, %v2303
    %v2544 = vpack.c.b16 %v2306, %v2304
    %v2545 = vpack.c.b16 %v2309, %v2307
    %v2546 = vpack.c.b16 %v2310, %v2308
    %v2547 = vpack.c.b16 %v2313, %v2311
    %v2548 = vpack.c.b16 %v2314, %v2312
    %v2549 = vpack.c.b16 %v2317, %v2315
    %v2550 = vpack.c.b16 %v2318, %v2316
    %v2551 = vpack.c.b16 %v2321, %v2319
    %v2552 = vpack.c.b16 %v2322, %v2320
    %v2553 = vpack.c.b16 %v2325, %v2323
    %v2554 = vpack.c.b16 %v2326, %v2324
    %v2555 = vpack.c.b16 %v2329, %v2327
    %v2556 = vpack.c.b16 %v2330, %v2328
    %v2557 = vpack.c.b16 %v2333, %v2331
    %v2558 = vpack.c.b16 %v2334, %v2332
    %v2559 = vpack.c.b16 %v2337, %v2335
    %v2560 = vpack.c.b16 %v2338, %v2336
    %v2561 = vpack.c.b16 %v2341, %v2339
    %v2562 = vpack.c.b16 %v2342, %v2340
    %v2563 = vpack.c.b16 %v2345, %v2343
    %v2564 = vpack.c.b16 %v2346, %v2344
    %v2565 = vpack.c.b16 %v2349, %v2347
    %v2566 = vpack.c.b16 %v2350, %v2348
    %v2567 = vpack.c.b16 %v2353, %v2351
    %v2568 = vpack.c.b16 %v2354, %v2352
    %v2569 = vpack.c.b16 %v2357, %v2355
    %v2570 = vpack.c.b16 %v2358, %v2356
    %v2571 = vpack.c.b16 %v2361, %v2359
    %v2572 = vpack.c.b16 %v2362, %v2360
    %v2573 = vpack.c.b16 %v2365, %v2363
    %v2574 = vpack.c.b16 %v2366, %v2364
    %v2575 = vpack.c.b16 %v2369, %v2367
    %v2576 = vpack.c.b16 %v2370, %v2368
    %v2577 = vpack.c.b16 %v2373, %v2371
    %v2578 = vpack.c.b16 %v2374, %v2372
    %v2579 = vpack.c.b16 %v2377, %v2375
    %v2580 = vpack.c.b16 %v2378, %v2376
    %v2581 = vpack.c.b16 %v2381, %v2379
    %v2582 = vpack.c.b16 %v2382, %v2380
    %v2583 = vpack.c.b16 %v2385, %v2383
    %v2584 = vpack.c.b16 %v2386, %v2384
    %v2585 = vpack.c.b16 %v2389, %v2387
    %v2586 = vpack.c.b16 %v2390, %v2388
    %v2587 = vpack.c.b16 %v2393, %v2391
    %v2588 = vpack.c.b16 %v2394, %v2392
    %v2589 = vpack.c.b16 %v2397, %v2395
    %v2590 = vpack.c.b16 %v2398, %v2396
    %v2591 = vpack.c.b16 %v2401, %v2399
    %v2592 = vpack.c.b16 %v2402, %v2400
    %v2593 = vpack.c.b16 %v2405, %v2403
    %v2594 = vpack.c.b16 %v2406, %v2404
    %v2595 = vpack.c.b16 %v2409, %v2407
    %v2596 = vpack.c.b16 %v2410, %v2408
    %v2597 = vpack.c.b16 %v2413, %v2411
    %v2598 = vpack.c.b16 %v2414, %v2412
    %v2599 = vpack.c.b16 %v2417, %v2415
    %v2600 = vpack.c.b16 %v2418, %v2416
    %v2601 = vpack.c.b16 %v2421, %v2419
    %v2602 = vpack.c.b16 %v2422, %v2420
    %v2603 = vpack.c.b16 %v2425, %v2423
    %v2604 = vpack.c.b16 %v2426, %v2424
    %v2605 = vpack.c.b16 %v2429, %v2427
    %v2606 = vpack.c.b16 %v2430, %v2428
    %v2607 = vpack.c.b16 %v2433, %v2431
    %v2608 = vpack.c.b16 %v2434, %v2432
    %v2609 = vpack.c.b16 %v2437, %v2435
    %v2610 = vpack.c.b16 %v2438, %v2436
    %v2611 = vpack.c.b16 %v2441, %v2439
    %v2612 = vpack.c.b16 %v2442, %v2440
    %v2613 = vpack.c.b16 %v2445, %v2443
    %v2614 = vpack.c.b16 %v2446, %v2444
    %v2615 = vpack.c.b16 %v2449, %v2447
    %v2616 = vpack.c.b16 %v2450, %v2448
    %v2617 = vpack.c.b16 %v2453, %v2451
    %v2618 = vpack.c.b16 %v2454, %v2452
    %v2619 = vpack.c.b16 %v2457, %v2455
    %v2620 = vpack.c.b16 %v2458, %v2456
    %v2621 = vpack.c.b16 %v2461, %v2459
    %v2622 = vpack.c.b16 %v2462, %v2460
    %v2623 = vpack.c.b16 %v2465, %v2463
    %v2624 = vpack.c.b16 %v2466, %v2464
    %v2625 = vpack.c.b16 %v2469, %v2467
    %v2626 = vpack.c.b16 %v2470, %v2468
    %v2627 = vpack.c.b16 %v2473, %v2471
    %v2628 = vpack.c.b16 %v2474, %v2472
    %v2629 = vpack.c.b16 %v2477, %v2475
    %v2630 = vpack.c.b16 %v2478, %v2476
    %v2631 = vpack.c.b16 %v2481, %v2479
    %v2632 = vpack.c.b16 %v2482, %v2480
    %v2633 = vpack.c.b16 %v2485, %v2483
    %v2634 = vpack.c.b16 %v2486, %v2484
    %v2635 = vpack.c.b16 %v2489, %v2487
    %v2636 = vpack.c.b16 %v2490, %v2488
    %v2637 = vpack.c.b16 %v2493, %v2491
    %v2638 = vpack.c.b16 %v2494, %v2492
    %v2639 = vpack.c.b16 %v2497, %v2495
    %v2640 = vpack.c.b16 %v2498, %v2496
    %v2641 = vpack.c.b16 %v2501, %v2499
    %v2642 = vpack.c.b16 %v2502, %v2500
    %v2643 = vpack.c.b16 %v2505, %v2503
    %v2644 = vpack.c.b16 %v2506, %v2504
    %v2645 = vpack.c.b16 %v2509, %v2507
    %v2646 = vpack.c.b16 %v2510, %v2508
    %v2647 = vpack.c.b16 %v2513, %v2511
    %v2648 = vpack.c.b16 %v2514, %v2512
    %v2649 = vpack.c.b16 %v2517, %v2515
    %v2650 = vpack.c.b16 %v2518, %v2516
    %v2651 = vpack.c.b16 %v2521, %v2519
    %v2652 = vpack.c.b16 %v2522, %v2520
    %v2653 = vpack.c.b16 %v2525, %v2523
    %v2654 = vpack.c.b16 %v2526, %v2524
    %2783 = vmatprep.subr.bf16.mxu0 %v2528
    %2784 = vmatpush1.bf16.msra.mxu0 %v2527
    %2785 = vmatprep.subr.bf16.mxu0 %v2530
    %2786 = vmatpush1.bf16.msra.mxu0 %v2529
    %2787 = vmatprep.subr.bf16.mxu0 %v2532
    %2788 = vmatpush1.bf16.msra.mxu0 %v2531
    %2789 = vmatprep.subr.bf16.mxu0 %v2534
    %2790 = vmatpush1.bf16.msra.mxu0 %v2533
    %2791 = vmatprep.subr.bf16.mxu0 %v2536
    %2792 = vmatpush1.bf16.msra.mxu0 %v2535
    %2793 = vmatprep.subr.bf16.mxu0 %v2538
    %2794 = vmatpush1.bf16.msra.mxu0 %v2537
    %2795 = vmatprep.subr.bf16.mxu0 %v2540
    %2796 = vmatpush1.bf16.msra.mxu0 %v2539
    %2797 = vmatprep.subr.bf16.mxu0 %v2542
    %2798 = vmatpush1.bf16.msra.mxu0 %v2541
    %2799 = vmatprep.subr.bf16.mxu0 %v2544
    %2800 = vmatpush1.bf16.msra.mxu0 %v2543
    %2801 = vmatprep.subr.bf16.mxu0 %v2546
    %2802 = vmatpush1.bf16.msra.mxu0 %v2545
    %2803 = vmatprep.subr.bf16.mxu0 %v2548
    %2804 = vmatpush1.bf16.msra.mxu0 %v2547
    %2805 = vmatprep.subr.bf16.mxu0 %v2550
    %2806 = vmatpush1.bf16.msra.mxu0 %v2549
    %2807 = vmatprep.subr.bf16.mxu0 %v2552
    %2808 = vmatpush1.bf16.msra.mxu0 %v2551
    %2809 = vmatprep.subr.bf16.mxu0 %v2554
    %2810 = vmatpush1.bf16.msra.mxu0 %v2553
    %2811 = vmatprep.subr.bf16.mxu0 %v2556
    %2812 = vmatpush1.bf16.msra.mxu0 %v2555
    %2813 = vmatprep.subr.bf16.mxu0 %v2558
    %2814 = vmatpush1.bf16.msra.mxu0 %v2557
    %2815 = vmatprep.mubr.bf16.mxu0 %v1996
    %2816 = vmatmul.mubr.bf16.gmra.mrb[0].mxu0 %v1995
    %v2817 = vpop.f32.mrb[0].mxu0
    %v2818 = vadd.f32 %v2136, %v2817
    %v2819 = vpop.f32.mrb[0].mxu0
    %v2820 = vadd.f32 %v2140, %v2819
    %v2821 = vpop.f32.mrb[0].mxu0
    %v2822 = vpop.f32.mrb[0].mxu0
    %2823 = vdwg.mxu0
    %2824 = vmatprep.subr.bf16.mxu0 %v2560
    %2825 = vmatpush1.bf16.msra.mxu0 %v2559
    %2826 = vmatprep.subr.bf16.mxu0 %v2562
    %2827 = vmatpush1.bf16.msra.mxu0 %v2561
    %2828 = vmatprep.subr.bf16.mxu0 %v2564
    %2829 = vmatpush1.bf16.msra.mxu0 %v2563
    %2830 = vmatprep.subr.bf16.mxu0 %v2566
    %2831 = vmatpush1.bf16.msra.mxu0 %v2565
    %2832 = vmatprep.subr.bf16.mxu0 %v2568
    %2833 = vmatpush1.bf16.msra.mxu0 %v2567
    %2834 = vmatprep.subr.bf16.mxu0 %v2570
    %2835 = vmatpush1.bf16.msra.mxu0 %v2569
    %2836 = vmatprep.subr.bf16.mxu0 %v2572
    %2837 = vmatpush1.bf16.msra.mxu0 %v2571
    %2838 = vmatprep.subr.bf16.mxu0 %v2574
    %2839 = vmatpush1.bf16.msra.mxu0 %v2573
    %2840 = vmatprep.subr.bf16.mxu0 %v2576
    %2841 = vmatpush1.bf16.msra.mxu0 %v2575
    %2842 = vmatprep.subr.bf16.mxu0 %v2578
    %2843 = vmatpush1.bf16.msra.mxu0 %v2577
    %2844 = vmatprep.subr.bf16.mxu0 %v2580
    %2845 = vmatpush1.bf16.msra.mxu0 %v2579
    %2846 = vmatprep.subr.bf16.mxu0 %v2582
    %2847 = vmatpush1.bf16.msra.mxu0 %v2581
    %2848 = vmatprep.subr.bf16.mxu0 %v2584
    %2849 = vmatpush1.bf16.msra.mxu0 %v2583
    %2850 = vmatprep.subr.bf16.mxu0 %v2586
    %2851 = vmatpush1.bf16.msra.mxu0 %v2585
    %2852 = vmatprep.subr.bf16.mxu0 %v2588
    %2853 = vmatpush1.bf16.msra.mxu0 %v2587
    %2854 = vmatprep.subr.bf16.mxu0 %v2590
    %2855 = vmatpush1.bf16.msra.mxu0 %v2589
    %2856 = vmatprep.mubr.bf16.mxu0 %v1998
    %2857 = vmatmul.mubr.bf16.gmra.mrb[0].mxu0 %v1997
    %v2858 = vpop.f32.mrb[0].mxu0
    %v2859 = vadd.f32 %v2818, %v2858
    %v2860 = vpop.f32.mrb[0].mxu0
    %v2861 = vadd.f32 %v2820, %v2860
    %v2862 = vpop.f32.mrb[0].mxu0
    %v2863 = vpop.f32.mrb[0].mxu0
    %2864 = vdwg.mxu0
    %2865 = vmatprep.subr.bf16.mxu0 %v2592
    %2866 = vmatpush1.bf16.msra.mxu0 %v2591
    %2867 = vmatprep.subr.bf16.mxu0 %v2594
    %2868 = vmatpush1.bf16.msra.mxu0 %v2593
    %2869 = vmatprep.subr.bf16.mxu0 %v2596
    %2870 = vmatpush1.bf16.msra.mxu0 %v2595
    %2871 = vmatprep.subr.bf16.mxu0 %v2598
    %2872 = vmatpush1.bf16.msra.mxu0 %v2597
    %2873 = vmatprep.subr.bf16.mxu0 %v2600
    %2874 = vmatpush1.bf16.msra.mxu0 %v2599
    %2875 = vmatprep.subr.bf16.mxu0 %v2602
    %2876 = vmatpush1.bf16.msra.mxu0 %v2601
    %2877 = vmatprep.subr.bf16.mxu0 %v2604
    %2878 = vmatpush1.bf16.msra.mxu0 %v2603
    %2879 = vmatprep.subr.bf16.mxu0 %v2606
    %2880 = vmatpush1.bf16.msra.mxu0 %v2605
    %2881 = vmatprep.subr.bf16.mxu0 %v2608
    %2882 = vmatpush1.bf16.msra.mxu0 %v2607
    %2883 = vmatprep.subr.bf16.mxu0 %v2610
    %2884 = vmatpush1.bf16.msra.mxu0 %v2609
    %2885 = vmatprep.subr.bf16.mxu0 %v2612
    %2886 = vmatpush1.bf16.msra.mxu0 %v2611
    %2887 = vmatprep.subr.bf16.mxu0 %v2614
    %2888 = vmatpush1.bf16.msra.mxu0 %v2613
    %2889 = vmatprep.subr.bf16.mxu0 %v2616
    %2890 = vmatpush1.bf16.msra.mxu0 %v2615
    %2891 = vmatprep.subr.bf16.mxu0 %v2618
    %2892 = vmatpush1.bf16.msra.mxu0 %v2617
    %2893 = vmatprep.subr.bf16.mxu0 %v2620
    %2894 = vmatpush1.bf16.msra.mxu0 %v2619
    %2895 = vmatprep.subr.bf16.mxu0 %v2622
    %2896 = vmatpush1.bf16.msra.mxu0 %v2621
    %2897 = vmatprep.mubr.bf16.mxu0 %v2000
    %2898 = vmatmul.mubr.bf16.gmra.mrb[0].mxu0 %v1999
    %v2899 = vpop.f32.mrb[0].mxu0
    %v2900 = vadd.f32 %v2859, %v2899
    %v2901 = vpop.f32.mrb[0].mxu0
    %v2902 = vadd.f32 %v2861, %v2901
    %v2903 = vpop.f32.mrb[0].mxu0
    %v2904 = vpop.f32.mrb[0].mxu0
    %2905 = vdwg.mxu0
    %2906 = vmatprep.subr.bf16.mxu0 %v2624
    %2907 = vmatpush1.bf16.msra.mxu0 %v2623
    %2908 = vmatprep.subr.bf16.mxu0 %v2626
    %2909 = vmatpush1.bf16.msra.mxu0 %v2625
    %2910 = vmatprep.subr.bf16.mxu0 %v2628
    %2911 = vmatpush1.bf16.msra.mxu0 %v2627
    %2912 = vmatprep.subr.bf16.mxu0 %v2630
    %2913 = vmatpush1.bf16.msra.mxu0 %v2629
    %2914 = vmatprep.subr.bf16.mxu0 %v2632
    %2915 = vmatpush1.bf16.msra.mxu0 %v2631
    %2916 = vmatprep.subr.bf16.mxu0 %v2634
    %2917 = vmatpush1.bf16.msra.mxu0 %v2633
    %2918 = vmatprep.subr.bf16.mxu0 %v2636
    %2919 = vmatpush1.bf16.msra.mxu0 %v2635
    %2920 = vmatprep.subr.bf16.mxu0 %v2638
    %2921 = vmatpush1.bf16.msra.mxu0 %v2637
    %2922 = vmatprep.subr.bf16.mxu0 %v2640
    %2923 = vmatpush1.bf16.msra.mxu0 %v2639
    %2924 = vmatprep.subr.bf16.mxu0 %v2642
    %2925 = vmatpush1.bf16.msra.mxu0 %v2641
    %2926 = vmatprep.subr.bf16.mxu0 %v2644
    %2927 = vmatpush1.bf16.msra.mxu0 %v2643
    %2928 = vmatprep.subr.bf16.mxu0 %v2646
    %2929 = vmatpush1.bf16.msra.mxu0 %v2645
    %2930 = vmatprep.subr.bf16.mxu0 %v2648
    %2931 = vmatpush1.bf16.msra.mxu0 %v2647
    %2932 = vmatprep.subr.bf16.mxu0 %v2650
    %2933 = vmatpush1.bf16.msra.mxu0 %v2649
    %2934 = vmatprep.subr.bf16.mxu0 %v2652
    %2935 = vmatpush1.bf16.msra.mxu0 %v2651
    %2936 = vmatprep.subr.bf16.mxu0 %v2654
    %2937 = vmatpush1.bf16.msra.mxu0 %v2653
    %2938 = vmatprep.mubr.bf16.mxu0 %v2002
    %2939 = vmatmul.mubr.bf16.gmra.mrb[0].mxu0 %v2001
    %v2940 = vpop.f32.mrb[0].mxu0
    %v2941 = vadd.f32 %v2900, %v2940
    %v2942 = vpop.f32.mrb[0].mxu0
    %v2943 = vadd.f32 %v2902, %v2942
    %v2944 = vpop.f32.mrb[0].mxu0
    %v2945 = vpop.f32.mrb[0].mxu0
    %2946 = vdwg.mxu0
    %v2947 = vmax.f32 %v2941, 0.0
    %v2948 = vmax.f32 %v2943, 0.0
    %v2949 = vld [vmem:[%s5] sm:$0x3]
    %v2951 = vlaneseq
    %v2952 = vshrl.u32 %v2951, 7
    %v2953 = vsub.s32 0, %v2952
    %v2954 = vrot.slane %v2949, %v2953
    %v2955 = vlaneseq
    %v2956 = vshrl.u32 %v2955, 7
    %v2957 = vsub.s32 1, %v2956
    %v2958 = vrot.slane %v2949, %v2957
    %v2961 = vmul.f32 %v2947, %v2954
    %v2962 = vmul.f32 %v2948, %v2958
    %v2963 = vadd.f32 %v2961, %v2962
    %2964 = vadd.xlane.f32.xlu0 %v2963
    %v2965 = vpop.xlane.xlu0 %2964
    %v2966 = vld [vmem:[#allocation2] sm:$0x1]
    %v2968 = vlaneseq
    %v2969 = vshrl.u32 %v2968, 7
    %v2970 = vsub.s32 0, %v2969
    %v2971 = vrot.slane %v2966, %v2970
    %v2973 = vadd.f32 %v2965, %v2971
    %2975 = vset.pattern.permute.xlu0 0
    %2976 = vperm.xlu0 %2975, %v2973
    %v2977 = vpop.permute.xlu0 %2976
    %2979 = vst [vmem:[#allocation9] sm:$0xff] %v2977
    // Predicated region
    $region42: #{tpu_custom_call.1} parent=1 // pred_check
      _
    $region43: #{tpu_custom_call.1} parent=1 // pred_check_branch
      %2981 = sbr.rel (0) target = $region45
    $region44: #{tpu_custom_call.1} parent=1 // pred_region
      %s2983 = ssub.s32 128, 128
      %2984 = vsyncadd [#allocation5], %s2983
      %s2986 = sshll.u32 [#allocation9], 4
      %s2987 = int_to_ptr.vmem [resolvable:$true] %s2986
      %2989 = dma.vmem_to_hbm [thread:$0]  %s2987, 128, %s7, [#allocation5]
    $region45: #{tpu_custom_call.1} parent=1 // pred_fallthru
      _
    // Predicated region
    $region46: #{tpu_custom_call.1} parent=1 // pred_check
      _
    $region47: #{tpu_custom_call.1} parent=1 // pred_check_branch
      %2991 = sbr.rel (0) target = $region49
    $region48: #{tpu_custom_call.1} parent=1 // pred_region
      %2992 = dma.done [#allocation5], 128
    $region49: #{tpu_custom_call.1} parent=1 // pred_fallthru
      _
    %2993 = vsyncpa [#allocation4], 1
    %2994 = vsyncpa [#allocation7], 1
    %2995 = vsyncpa [#allocation5], 1

</llo_original>
